<compile_context>
chip_gen: v7x
topology: tpu7x:2x2x1
jax: 0.10.0
libtpu: 0.0.40
codegen_flags: <defaults>
</compile_context>

<pallas_src>
import math
import numpy as np
import jax
import jax.numpy as jnp
from jax.experimental import pallas as pl
from jax.experimental.pallas import tpu as pltpu

# Shapes implied by the module-level `user = item = torch.zeros((1, 2000))`.
L_IN = 2000        # sequence length of user / item vectors
C_IN = 2           # cat(user, item) along the channel dim
C1, C2 = 4, 6      # conv output channels
K = 5              # conv kernel size
PW, PS = 5, 2      # maxpool window / stride

L1 = L_IN - K + 1            # 1996 : Conv1d(2, 4, 5, 1)
P1 = (L1 - PW) // PS + 1     # 996  : MaxPool1d(5, 2)
L2 = P1 - K + 1              # 992  : Conv1d(4, 6, 5, 1)
P2 = (L2 - PW) // PS + 1     # 494  : MaxPool1d(5, 2)

# Polyphase bookkeeping (two stride-2 pools => mod-4 phases at stage 1).
NPH = PS * PS                # 4 input phases
LP = L_IN // NPH             # 500 : length of each input phase
LC1 = L1 // NPH              # 499 : length of each conv1 output phase (mod 4)
LP1 = P1 // PS               # 498 : length of each pool1 output phase (mod 2)
LC2 = L2 // PS               # 496 : length of each conv2 output phase (mod 2)
assert L1 % NPH == 0 and P1 % PS == 0 and L2 % PS == 0


def _max5(a, b, c, d, e):
    return jnp.maximum(jnp.maximum(jnp.maximum(a, b), jnp.maximum(c, d)), e)


def _als_cnn_kernel(xph_ref, w1_ref, b1_ref, w2_ref, b2_ref, out_ref):
    # xph_ref : (4, C_IN, LP)   input phases, xph[s][ic, m] = x[ic, 4m + s]
    # w1_ref  : (K*C_IN, C1, 1) per-(tap, in-channel) weight columns
    # w2_ref  : (K*C1,  C2, 1)
    # b1_ref  : (C1, 1), b2_ref : (C2, 1)
    xph = [xph_ref[s] for s in range(NPH)]            # 4 x (C_IN, LP) values
    b1 = b1_ref[...]
    b2 = b2_ref[...]

    # ---- Conv1d(2 -> 4, k=5, stride=1), evaluated per output phase r (mod 4):
    #      c1_r[:, i] = c1[:, 4i + r] = b1 + sum_k W1[:, :, k] @ x[:, 4i + r + k]
    #      x[:, 4i+r+k] lives in input phase (r+k)%4 at offset (r+k)//4 — unit stride.
    c1 = []
    for r in range(NPH):
        acc = jnp.zeros((C1, LC1), jnp.float32)
        for k in range(K):
            s = (r + k) % NPH
            q = (r + k) // NPH
            for ic in range(C_IN):
                w = w1_ref[k * C_IN + ic]              # (C1, 1) weight column
                acc = acc + w * xph[s][ic:ic + 1, q:q + LC1]   # VPU broadcast FMA
        c1.append(acc + b1)                            # 4 x (C1, LC1)

    # ---- MaxPool1d(5, 2) on c1, emitted directly as even/odd output phases:
    #      p1[2m]   = max(c1[4m .. 4m+4]);  p1[2m+1] = max(c1[4m+2 .. 4m+6])
    p1 = [
        _max5(c1[0][:, :LP1], c1[1][:, :LP1], c1[2][:, :LP1],
              c1[3][:, :LP1], c1[0][:, 1:1 + LP1]),
        _max5(c1[2][:, :LP1], c1[3][:, :LP1], c1[0][:, 1:1 + LP1],
              c1[1][:, 1:1 + LP1], c1[2][:, 1:1 + LP1]),
    ]                                                  # 2 x (C1, LP1)

    # ---- Conv1d(4 -> 6, k=5, stride=1), per output phase r (mod 2):
    #      c2_r[:, i] = c2[:, 2i + r] = b2 + sum_k W2[:, :, k] @ p1[:, 2i + r + k]
    c2 = []
    for r in range(PS):
        acc = jnp.zeros((C2, LC2), jnp.float32)
        for k in range(K):
            s = (r + k) % PS
            q = (r + k) // PS
            for ic in range(C1):
                w = w2_ref[k * C1 + ic]                # (C2, 1)
                acc = acc + w * p1[s][ic:ic + 1, q:q + LC2]
        c2.append(acc + b2)                            # 2 x (C2, LC2)

    # ---- MaxPool1d(5, 2) on c2 -> contiguous (C2, P2); no decimation needed.
    out_ref[...] = _max5(c2[0][:, :P2], c2[1][:, :P2], c2[0][:, 1:1 + P2],
                         c2[1][:, 1:1 + P2], c2[0][:, 2:2 + P2])


def instant_als_net_forward(user, item, params):
    """user, item: (1, L_IN) float32 -> (1, C2*P2) float32 (output of net5/Flatten).

    TODO(synk): the PyTorch forward() ends with `pass; return` (returns None) and never
    uses encoder1/encoder2 or net6..; we return the activation computed through net5.
    """
    w1, b1, w2, b2 = params["w1"], params["b1"], params["w2"], params["b2"]
    x = jnp.concatenate([user, item], axis=0).astype(jnp.float32)     # (2, 2000)

    # mod-4 polyphase split of the (tiny) input — plain-JAX layout plumbing so the
    # kernel never needs a strided lane access.
    xph = jnp.stack([x[:, s::NPH] for s in range(NPH)], axis=0)       # (4, 2, 500)

    # Weight columns keyed by (tap k, in-channel ic): row k*C_in + ic holds w[:, ic, k]
    # as a (C_out, 1) column so the kernel does (C_out,1)*(1,L) VPU broadcast FMAs.
    w1c = jnp.transpose(w1, (2, 1, 0)).reshape(K * C_IN, C1)[..., None]   # (10, 4, 1)
    w2c = jnp.transpose(w2, (2, 1, 0)).reshape(K * C1, C2)[..., None]     # (20, 6, 1)
    b1c = b1.reshape(C1, 1)
    b2c = b2.reshape(C2, 1)

    vmem = pl.BlockSpec(memory_space=pltpu.MemorySpace.VMEM)
    feat = pl.pallas_call(
        _als_cnn_kernel,
        out_shape=jax.ShapeDtypeStruct((C2, P2), jnp.float32),
        in_specs=[vmem] * 5,
        out_specs=vmem,
    )(xph, w1c, b1c, w2c, b2c)

    return feat.reshape(1, C2 * P2)              # nn.Flatten on (1, 6, 494) -> (1, 2964)


def init_params(key):
    # Deterministic synthetic init (PyTorch-Conv1d-style uniform bounds).
    # encoder1/encoder2 (Embedding) and net6 Linear(5*1993, 2000) are never used
    # in forward(), so they are not instantiated here.
    k1, k2, k3, k4 = jax.random.split(key, 4)
    bound1 = 1.0 / math.sqrt(C_IN * K)
    bound2 = 1.0 / math.sqrt(C1 * K)
    return {
        "w1": jax.random.uniform(k1, (C1, C_IN, K), jnp.float32, -bound1, bound1),
        "b1": jax.random.uniform(k2, (C1,), jnp.float32, -bound1, bound1),
        "w2": jax.random.uniform(k3, (C2, C1, K), jnp.float32, -bound2, bound2),
        "b2": jax.random.uniform(k4, (C2,), jnp.float32, -bound2, bound2),
    }


def _ref_forward(x, w1, b1, w2, b2):
    """Pure-numpy reference of net1..net5 on (C_IN, L_IN) input (non-polyphase)."""
    def conv1d(x, w, b):
        co, ci, kk = w.shape
        L = x.shape[1] - kk + 1
        out = np.tile(b[:, None], (1, L)).astype(np.float32)
        for k in range(kk):
            out = out + w[:, :, k] @ x[:, k:k + L]
        return out

    def maxpool(x, win=PW, st=PS):
        L = (x.shape[1] - win) // st + 1
        cols = [x[:, k:k + st * (L - 1) + 1:st] for k in range(win)]
        return np.max(np.stack(cols, axis=0), axis=0)

    c1 = conv1d(x, w1, b1)
    p1 = maxpool(c1)
    c2 = conv1d(p1, w2, b2)
    p2 = maxpool(c2)
    return p2.reshape(1, -1)


if __name__ == "__main__":
    key = jax.random.PRNGKey(0)
    pkey, ukey, ikey = jax.random.split(key, 3)
    params = init_params(pkey)
    user = jax.random.normal(ukey, (1, L_IN), jnp.float32)
    item = jax.random.normal(ikey, (1, L_IN), jnp.float32)

    out = instant_als_net_forward(user, item, params)
    out = jax.block_until_ready(out)
    assert out.shape == (1, C2 * P2), out.shape

    ref = _ref_forward(
        np.asarray(jnp.concatenate([user, item], axis=0), dtype=np.float32),
        np.asarray(params["w1"]), np.asarray(params["b1"]),
        np.asarray(params["w2"]), np.asarray(params["b2"]))
    np.testing.assert_allclose(np.asarray(out), ref, rtol=1e-3, atol=1e-3)

    print("KERNEL_OK")
</pallas_src>

<mosaic_0001>
module attributes {stable_mosaic.version = 11 : i64} {
  func.func @_als_cnn_kernel(%arg0: memref<4x2x500xf32, #tpu.memory_space<vmem>>, %arg1: memref<10x4x1xf32, #tpu.memory_space<vmem>>, %arg2: memref<4x1xf32, #tpu.memory_space<vmem>>, %arg3: memref<20x6x1xf32, #tpu.memory_space<vmem>>, %arg4: memref<6x1xf32, #tpu.memory_space<vmem>>, %arg5: memref<6x494xf32, #tpu.memory_space<vmem>>) attributes {dimension_semantics = [], scalar_prefetch = 0 : i64, scratch_operands = 0 : i64, tpu.core_type = #tpu.core_type<tc>} {
    %c0 = arith.constant 0 : index
    %c0_0 = arith.constant 0 : index
    %c0_1 = arith.constant 0 : index
    %0 = vector.load %arg0[%c0, %c0_0, %c0_1] : memref<4x2x500xf32, #tpu.memory_space<vmem>>, vector<1x2x500xf32>
    %1 = vector.shape_cast %0 : vector<1x2x500xf32> to vector<2x500xf32>
    %c1 = arith.constant 1 : index
    %c0_2 = arith.constant 0 : index
    %c0_3 = arith.constant 0 : index
    %2 = vector.load %arg0[%c1, %c0_2, %c0_3] : memref<4x2x500xf32, #tpu.memory_space<vmem>>, vector<1x2x500xf32>
    %3 = vector.shape_cast %2 : vector<1x2x500xf32> to vector<2x500xf32>
    %c2 = arith.constant 2 : index
    %c0_4 = arith.constant 0 : index
    %c0_5 = arith.constant 0 : index
    %4 = vector.load %arg0[%c2, %c0_4, %c0_5] : memref<4x2x500xf32, #tpu.memory_space<vmem>>, vector<1x2x500xf32>
    %5 = vector.shape_cast %4 : vector<1x2x500xf32> to vector<2x500xf32>
    %c3 = arith.constant 3 : index
    %c0_6 = arith.constant 0 : index
    %c0_7 = arith.constant 0 : index
    %6 = vector.load %arg0[%c3, %c0_6, %c0_7] : memref<4x2x500xf32, #tpu.memory_space<vmem>>, vector<1x2x500xf32>
    %7 = vector.shape_cast %6 : vector<1x2x500xf32> to vector<2x500xf32>
    %c0_8 = arith.constant 0 : index
    %c0_9 = arith.constant 0 : index
    %8 = vector.load %arg2[%c0_8, %c0_9] : memref<4x1xf32, #tpu.memory_space<vmem>>, vector<4x1xf32>
    %c0_10 = arith.constant 0 : index
    %c0_11 = arith.constant 0 : index
    %9 = vector.load %arg4[%c0_10, %c0_11] : memref<6x1xf32, #tpu.memory_space<vmem>>, vector<6x1xf32>
    %cst = arith.constant 0.000000e+00 : f32
    %10 = vector.broadcast %cst : f32 to vector<4x499xf32>
    %c0_12 = arith.constant 0 : index
    %c0_13 = arith.constant 0 : index
    %c0_14 = arith.constant 0 : index
    %11 = vector.load %arg1[%c0_12, %c0_13, %c0_14] : memref<10x4x1xf32, #tpu.memory_space<vmem>>, vector<1x4x1xf32>
    %12 = vector.shape_cast %11 : vector<1x4x1xf32> to vector<4x1xf32>
    %13 = vector.extract_strided_slice %1 {offsets = [0, 0], sizes = [1, 499], strides = [1, 1]} : vector<2x500xf32> to vector<1x499xf32>
    %14 = vector.broadcast %12 : vector<4x1xf32> to vector<4x499xf32>
    %15 = vector.broadcast %13 : vector<1x499xf32> to vector<4x499xf32>
    %16 = arith.mulf %14, %15 : vector<4x499xf32>
    %17 = arith.addf %10, %16 : vector<4x499xf32>
    %c1_15 = arith.constant 1 : index
    %c0_16 = arith.constant 0 : index
    %c0_17 = arith.constant 0 : index
    %18 = vector.load %arg1[%c1_15, %c0_16, %c0_17] : memref<10x4x1xf32, #tpu.memory_space<vmem>>, vector<1x4x1xf32>
    %19 = vector.shape_cast %18 : vector<1x4x1xf32> to vector<4x1xf32>
    %20 = vector.extract_strided_slice %1 {offsets = [1, 0], sizes = [1, 499], strides = [1, 1]} : vector<2x500xf32> to vector<1x499xf32>
    %21 = vector.broadcast %19 : vector<4x1xf32> to vector<4x499xf32>
    %22 = vector.broadcast %20 : vector<1x499xf32> to vector<4x499xf32>
    %23 = arith.mulf %21, %22 : vector<4x499xf32>
    %24 = arith.addf %17, %23 : vector<4x499xf32>
    %c2_18 = arith.constant 2 : index
    %c0_19 = arith.constant 0 : index
    %c0_20 = arith.constant 0 : index
    %25 = vector.load %arg1[%c2_18, %c0_19, %c0_20] : memref<10x4x1xf32, #tpu.memory_space<vmem>>, vector<1x4x1xf32>
    %26 = vector.shape_cast %25 : vector<1x4x1xf32> to vector<4x1xf32>
    %27 = vector.extract_strided_slice %3 {offsets = [0, 0], sizes = [1, 499], strides = [1, 1]} : vector<2x500xf32> to vector<1x499xf32>
    %28 = vector.broadcast %26 : vector<4x1xf32> to vector<4x499xf32>
    %29 = vector.broadcast %27 : vector<1x499xf32> to vector<4x499xf32>
    %30 = arith.mulf %28, %29 : vector<4x499xf32>
    %31 = arith.addf %24, %30 : vector<4x499xf32>
    %c3_21 = arith.constant 3 : index
    %c0_22 = arith.constant 0 : index
    %c0_23 = arith.constant 0 : index
    %32 = vector.load %arg1[%c3_21, %c0_22, %c0_23] : memref<10x4x1xf32, #tpu.memory_space<vmem>>, vector<1x4x1xf32>
    %33 = vector.shape_cast %32 : vector<1x4x1xf32> to vector<4x1xf32>
    %34 = vector.extract_strided_slice %3 {offsets = [1, 0], sizes = [1, 499], strides = [1, 1]} : vector<2x500xf32> to vector<1x499xf32>
    %35 = vector.broadcast %33 : vector<4x1xf32> to vector<4x499xf32>
    %36 = vector.broadcast %34 : vector<1x499xf32> to vector<4x499xf32>
    %37 = arith.mulf %35, %36 : vector<4x499xf32>
    %38 = arith.addf %31, %37 : vector<4x499xf32>
    %c4 = arith.constant 4 : index
    %c0_24 = arith.constant 0 : index
    %c0_25 = arith.constant 0 : index
    %39 = vector.load %arg1[%c4, %c0_24, %c0_25] : memref<10x4x1xf32, #tpu.memory_space<vmem>>, vector<1x4x1xf32>
    %40 = vector.shape_cast %39 : vector<1x4x1xf32> to vector<4x1xf32>
    %41 = vector.extract_strided_slice %5 {offsets = [0, 0], sizes = [1, 499], strides = [1, 1]} : vector<2x500xf32> to vector<1x499xf32>
    %42 = vector.broadcast %40 : vector<4x1xf32> to vector<4x499xf32>
    %43 = vector.broadcast %41 : vector<1x499xf32> to vector<4x499xf32>
    %44 = arith.mulf %42, %43 : vector<4x499xf32>
    %45 = arith.addf %38, %44 : vector<4x499xf32>
    %c5 = arith.constant 5 : index
    %c0_26 = arith.constant 0 : index
    %c0_27 = arith.constant 0 : index
    %46 = vector.load %arg1[%c5, %c0_26, %c0_27] : memref<10x4x1xf32, #tpu.memory_space<vmem>>, vector<1x4x1xf32>
    %47 = vector.shape_cast %46 : vector<1x4x1xf32> to vector<4x1xf32>
    %48 = vector.extract_strided_slice %5 {offsets = [1, 0], sizes = [1, 499], strides = [1, 1]} : vector<2x500xf32> to vector<1x499xf32>
    %49 = vector.broadcast %47 : vector<4x1xf32> to vector<4x499xf32>
    %50 = vector.broadcast %48 : vector<1x499xf32> to vector<4x499xf32>
    %51 = arith.mulf %49, %50 : vector<4x499xf32>
    %52 = arith.addf %45, %51 : vector<4x499xf32>
    %c6 = arith.constant 6 : index
    %c0_28 = arith.constant 0 : index
    %c0_29 = arith.constant 0 : index
    %53 = vector.load %arg1[%c6, %c0_28, %c0_29] : memref<10x4x1xf32, #tpu.memory_space<vmem>>, vector<1x4x1xf32>
    %54 = vector.shape_cast %53 : vector<1x4x1xf32> to vector<4x1xf32>
    %55 = vector.extract_strided_slice %7 {offsets = [0, 0], sizes = [1, 499], strides = [1, 1]} : vector<2x500xf32> to vector<1x499xf32>
    %56 = vector.broadcast %54 : vector<4x1xf32> to vector<4x499xf32>
    %57 = vector.broadcast %55 : vector<1x499xf32> to vector<4x499xf32>
    %58 = arith.mulf %56, %57 : vector<4x499xf32>
    %59 = arith.addf %52, %58 : vector<4x499xf32>
    %c7 = arith.constant 7 : index
    %c0_30 = arith.constant 0 : index
    %c0_31 = arith.constant 0 : index
    %60 = vector.load %arg1[%c7, %c0_30, %c0_31] : memref<10x4x1xf32, #tpu.memory_space<vmem>>, vector<1x4x1xf32>
    %61 = vector.shape_cast %60 : vector<1x4x1xf32> to vector<4x1xf32>
    %62 = vector.extract_strided_slice %7 {offsets = [1, 0], sizes = [1, 499], strides = [1, 1]} : vector<2x500xf32> to vector<1x499xf32>
    %63 = vector.broadcast %61 : vector<4x1xf32> to vector<4x499xf32>
    %64 = vector.broadcast %62 : vector<1x499xf32> to vector<4x499xf32>
    %65 = arith.mulf %63, %64 : vector<4x499xf32>
    %66 = arith.addf %59, %65 : vector<4x499xf32>
    %c8 = arith.constant 8 : index
    %c0_32 = arith.constant 0 : index
    %c0_33 = arith.constant 0 : index
    %67 = vector.load %arg1[%c8, %c0_32, %c0_33] : memref<10x4x1xf32, #tpu.memory_space<vmem>>, vector<1x4x1xf32>
    %68 = vector.shape_cast %67 : vector<1x4x1xf32> to vector<4x1xf32>
    %69 = vector.extract_strided_slice %1 {offsets = [0, 1], sizes = [1, 499], strides = [1, 1]} : vector<2x500xf32> to vector<1x499xf32>
    %70 = vector.broadcast %68 : vector<4x1xf32> to vector<4x499xf32>
    %71 = vector.broadcast %69 : vector<1x499xf32> to vector<4x499xf32>
    %72 = arith.mulf %70, %71 : vector<4x499xf32>
    %73 = arith.addf %66, %72 : vector<4x499xf32>
    %c9 = arith.constant 9 : index
    %c0_34 = arith.constant 0 : index
    %c0_35 = arith.constant 0 : index
    %74 = vector.load %arg1[%c9, %c0_34, %c0_35] : memref<10x4x1xf32, #tpu.memory_space<vmem>>, vector<1x4x1xf32>
    %75 = vector.shape_cast %74 : vector<1x4x1xf32> to vector<4x1xf32>
    %76 = vector.extract_strided_slice %1 {offsets = [1, 1], sizes = [1, 499], strides = [1, 1]} : vector<2x500xf32> to vector<1x499xf32>
    %77 = vector.broadcast %75 : vector<4x1xf32> to vector<4x499xf32>
    %78 = vector.broadcast %76 : vector<1x499xf32> to vector<4x499xf32>
    %79 = arith.mulf %77, %78 : vector<4x499xf32>
    %80 = arith.addf %73, %79 : vector<4x499xf32>
    %81 = vector.broadcast %8 : vector<4x1xf32> to vector<4x499xf32>
    %82 = arith.addf %80, %81 : vector<4x499xf32>
    %cst_36 = arith.constant 0.000000e+00 : f32
    %83 = vector.broadcast %cst_36 : f32 to vector<4x499xf32>
    %c0_37 = arith.constant 0 : index
    %c0_38 = arith.constant 0 : index
    %c0_39 = arith.constant 0 : index
    %84 = vector.load %arg1[%c0_37, %c0_38, %c0_39] : memref<10x4x1xf32, #tpu.memory_space<vmem>>, vector<1x4x1xf32>
    %85 = vector.shape_cast %84 : vector<1x4x1xf32> to vector<4x1xf32>
    %86 = vector.extract_strided_slice %3 {offsets = [0, 0], sizes = [1, 499], strides = [1, 1]} : vector<2x500xf32> to vector<1x499xf32>
    %87 = vector.broadcast %85 : vector<4x1xf32> to vector<4x499xf32>
    %88 = vector.broadcast %86 : vector<1x499xf32> to vector<4x499xf32>
    %89 = arith.mulf %87, %88 : vector<4x499xf32>
    %90 = arith.addf %83, %89 : vector<4x499xf32>
    %c1_40 = arith.constant 1 : index
    %c0_41 = arith.constant 0 : index
    %c0_42 = arith.constant 0 : index
    %91 = vector.load %arg1[%c1_40, %c0_41, %c0_42] : memref<10x4x1xf32, #tpu.memory_space<vmem>>, vector<1x4x1xf32>
    %92 = vector.shape_cast %91 : vector<1x4x1xf32> to vector<4x1xf32>
    %93 = vector.extract_strided_slice %3 {offsets = [1, 0], sizes = [1, 499], strides = [1, 1]} : vector<2x500xf32> to vector<1x499xf32>
    %94 = vector.broadcast %92 : vector<4x1xf32> to vector<4x499xf32>
    %95 = vector.broadcast %93 : vector<1x499xf32> to vector<4x499xf32>
    %96 = arith.mulf %94, %95 : vector<4x499xf32>
    %97 = arith.addf %90, %96 : vector<4x499xf32>
    %c2_43 = arith.constant 2 : index
    %c0_44 = arith.constant 0 : index
    %c0_45 = arith.constant 0 : index
    %98 = vector.load %arg1[%c2_43, %c0_44, %c0_45] : memref<10x4x1xf32, #tpu.memory_space<vmem>>, vector<1x4x1xf32>
    %99 = vector.shape_cast %98 : vector<1x4x1xf32> to vector<4x1xf32>
    %100 = vector.extract_strided_slice %5 {offsets = [0, 0], sizes = [1, 499], strides = [1, 1]} : vector<2x500xf32> to vector<1x499xf32>
    %101 = vector.broadcast %99 : vector<4x1xf32> to vector<4x499xf32>
    %102 = vector.broadcast %100 : vector<1x499xf32> to vector<4x499xf32>
    %103 = arith.mulf %101, %102 : vector<4x499xf32>
    %104 = arith.addf %97, %103 : vector<4x499xf32>
    %c3_46 = arith.constant 3 : index
    %c0_47 = arith.constant 0 : index
    %c0_48 = arith.constant 0 : index
    %105 = vector.load %arg1[%c3_46, %c0_47, %c0_48] : memref<10x4x1xf32, #tpu.memory_space<vmem>>, vector<1x4x1xf32>
    %106 = vector.shape_cast %105 : vector<1x4x1xf32> to vector<4x1xf32>
    %107 = vector.extract_strided_slice %5 {offsets = [1, 0], sizes = [1, 499], strides = [1, 1]} : vector<2x500xf32> to vector<1x499xf32>
    %108 = vector.broadcast %106 : vector<4x1xf32> to vector<4x499xf32>
    %109 = vector.broadcast %107 : vector<1x499xf32> to vector<4x499xf32>
    %110 = arith.mulf %108, %109 : vector<4x499xf32>
    %111 = arith.addf %104, %110 : vector<4x499xf32>
    %c4_49 = arith.constant 4 : index
    %c0_50 = arith.constant 0 : index
    %c0_51 = arith.constant 0 : index
    %112 = vector.load %arg1[%c4_49, %c0_50, %c0_51] : memref<10x4x1xf32, #tpu.memory_space<vmem>>, vector<1x4x1xf32>
    %113 = vector.shape_cast %112 : vector<1x4x1xf32> to vector<4x1xf32>
    %114 = vector.extract_strided_slice %7 {offsets = [0, 0], sizes = [1, 499], strides = [1, 1]} : vector<2x500xf32> to vector<1x499xf32>
    %115 = vector.broadcast %113 : vector<4x1xf32> to vector<4x499xf32>
    %116 = vector.broadcast %114 : vector<1x499xf32> to vector<4x499xf32>
    %117 = arith.mulf %115, %116 : vector<4x499xf32>
    %118 = arith.addf %111, %117 : vector<4x499xf32>
    %c5_52 = arith.constant 5 : index
    %c0_53 = arith.constant 0 : index
    %c0_54 = arith.constant 0 : index
    %119 = vector.load %arg1[%c5_52, %c0_53, %c0_54] : memref<10x4x1xf32, #tpu.memory_space<vmem>>, vector<1x4x1xf32>
    %120 = vector.shape_cast %119 : vector<1x4x1xf32> to vector<4x1xf32>
    %121 = vector.extract_strided_slice %7 {offsets = [1, 0], sizes = [1, 499], strides = [1, 1]} : vector<2x500xf32> to vector<1x499xf32>
    %122 = vector.broadcast %120 : vector<4x1xf32> to vector<4x499xf32>
    %123 = vector.broadcast %121 : vector<1x499xf32> to vector<4x499xf32>
    %124 = arith.mulf %122, %123 : vector<4x499xf32>
    %125 = arith.addf %118, %124 : vector<4x499xf32>
    %c6_55 = arith.constant 6 : index
    %c0_56 = arith.constant 0 : index
    %c0_57 = arith.constant 0 : index
    %126 = vector.load %arg1[%c6_55, %c0_56, %c0_57] : memref<10x4x1xf32, #tpu.memory_space<vmem>>, vector<1x4x1xf32>
    %127 = vector.shape_cast %126 : vector<1x4x1xf32> to vector<4x1xf32>
    %128 = vector.extract_strided_slice %1 {offsets = [0, 1], sizes = [1, 499], strides = [1, 1]} : vector<2x500xf32> to vector<1x499xf32>
    %129 = vector.broadcast %127 : vector<4x1xf32> to vector<4x499xf32>
    %130 = vector.broadcast %128 : vector<1x499xf32> to vector<4x499xf32>
    %131 = arith.mulf %129, %130 : vector<4x499xf32>
    %132 = arith.addf %125, %131 : vector<4x499xf32>
    %c7_58 = arith.constant 7 : index
    %c0_59 = arith.constant 0 : index
    %c0_60 = arith.constant 0 : index
    %133 = vector.load %arg1[%c7_58, %c0_59, %c0_60] : memref<10x4x1xf32, #tpu.memory_space<vmem>>, vector<1x4x1xf32>
    %134 = vector.shape_cast %133 : vector<1x4x1xf32> to vector<4x1xf32>
    %135 = vector.extract_strided_slice %1 {offsets = [1, 1], sizes = [1, 499], strides = [1, 1]} : vector<2x500xf32> to vector<1x499xf32>
    %136 = vector.broadcast %134 : vector<4x1xf32> to vector<4x499xf32>
    %137 = vector.broadcast %135 : vector<1x499xf32> to vector<4x499xf32>
    %138 = arith.mulf %136, %137 : vector<4x499xf32>
    %139 = arith.addf %132, %138 : vector<4x499xf32>
    %c8_61 = arith.constant 8 : index
    %c0_62 = arith.constant 0 : index
    %c0_63 = arith.constant 0 : index
    %140 = vector.load %arg1[%c8_61, %c0_62, %c0_63] : memref<10x4x1xf32, #tpu.memory_space<vmem>>, vector<1x4x1xf32>
    %141 = vector.shape_cast %140 : vector<1x4x1xf32> to vector<4x1xf32>
    %142 = vector.extract_strided_slice %3 {offsets = [0, 1], sizes = [1, 499], strides = [1, 1]} : vector<2x500xf32> to vector<1x499xf32>
    %143 = vector.broadcast %141 : vector<4x1xf32> to vector<4x499xf32>
    %144 = vector.broadcast %142 : vector<1x499xf32> to vector<4x499xf32>
    %145 = arith.mulf %143, %144 : vector<4x499xf32>
    %146 = arith.addf %139, %145 : vector<4x499xf32>
    %c9_64 = arith.constant 9 : index
    %c0_65 = arith.constant 0 : index
    %c0_66 = arith.constant 0 : index
    %147 = vector.load %arg1[%c9_64, %c0_65, %c0_66] : memref<10x4x1xf32, #tpu.memory_space<vmem>>, vector<1x4x1xf32>
    %148 = vector.shape_cast %147 : vector<1x4x1xf32> to vector<4x1xf32>
    %149 = vector.extract_strided_slice %3 {offsets = [1, 1], sizes = [1, 499], strides = [1, 1]} : vector<2x500xf32> to vector<1x499xf32>
    %150 = vector.broadcast %148 : vector<4x1xf32> to vector<4x499xf32>
    %151 = vector.broadcast %149 : vector<1x499xf32> to vector<4x499xf32>
    %152 = arith.mulf %150, %151 : vector<4x499xf32>
    %153 = arith.addf %146, %152 : vector<4x499xf32>
    %154 = vector.broadcast %8 : vector<4x1xf32> to vector<4x499xf32>
    %155 = arith.addf %153, %154 : vector<4x499xf32>
    %cst_67 = arith.constant 0.000000e+00 : f32
    %156 = vector.broadcast %cst_67 : f32 to vector<4x499xf32>
    %c0_68 = arith.constant 0 : index
    %c0_69 = arith.constant 0 : index
    %c0_70 = arith.constant 0 : index
    %157 = vector.load %arg1[%c0_68, %c0_69, %c0_70] : memref<10x4x1xf32, #tpu.memory_space<vmem>>, vector<1x4x1xf32>
    %158 = vector.shape_cast %157 : vector<1x4x1xf32> to vector<4x1xf32>
    %159 = vector.extract_strided_slice %5 {offsets = [0, 0], sizes = [1, 499], strides = [1, 1]} : vector<2x500xf32> to vector<1x499xf32>
    %160 = vector.broadcast %158 : vector<4x1xf32> to vector<4x499xf32>
    %161 = vector.broadcast %159 : vector<1x499xf32> to vector<4x499xf32>
    %162 = arith.mulf %160, %161 : vector<4x499xf32>
    %163 = arith.addf %156, %162 : vector<4x499xf32>
    %c1_71 = arith.constant 1 : index
    %c0_72 = arith.constant 0 : index
    %c0_73 = arith.constant 0 : index
    %164 = vector.load %arg1[%c1_71, %c0_72, %c0_73] : memref<10x4x1xf32, #tpu.memory_space<vmem>>, vector<1x4x1xf32>
    %165 = vector.shape_cast %164 : vector<1x4x1xf32> to vector<4x1xf32>
    %166 = vector.extract_strided_slice %5 {offsets = [1, 0], sizes = [1, 499], strides = [1, 1]} : vector<2x500xf32> to vector<1x499xf32>
    %167 = vector.broadcast %165 : vector<4x1xf32> to vector<4x499xf32>
    %168 = vector.broadcast %166 : vector<1x499xf32> to vector<4x499xf32>
    %169 = arith.mulf %167, %168 : vector<4x499xf32>
    %170 = arith.addf %163, %169 : vector<4x499xf32>
    %c2_74 = arith.constant 2 : index
    %c0_75 = arith.constant 0 : index
    %c0_76 = arith.constant 0 : index
    %171 = vector.load %arg1[%c2_74, %c0_75, %c0_76] : memref<10x4x1xf32, #tpu.memory_space<vmem>>, vector<1x4x1xf32>
    %172 = vector.shape_cast %171 : vector<1x4x1xf32> to vector<4x1xf32>
    %173 = vector.extract_strided_slice %7 {offsets = [0, 0], sizes = [1, 499], strides = [1, 1]} : vector<2x500xf32> to vector<1x499xf32>
    %174 = vector.broadcast %172 : vector<4x1xf32> to vector<4x499xf32>
    %175 = vector.broadcast %173 : vector<1x499xf32> to vector<4x499xf32>
    %176 = arith.mulf %174, %175 : vector<4x499xf32>
    %177 = arith.addf %170, %176 : vector<4x499xf32>
    %c3_77 = arith.constant 3 : index
    %c0_78 = arith.constant 0 : index
    %c0_79 = arith.constant 0 : index
    %178 = vector.load %arg1[%c3_77, %c0_78, %c0_79] : memref<10x4x1xf32, #tpu.memory_space<vmem>>, vector<1x4x1xf32>
    %179 = vector.shape_cast %178 : vector<1x4x1xf32> to vector<4x1xf32>
    %180 = vector.extract_strided_slice %7 {offsets = [1, 0], sizes = [1, 499], strides = [1, 1]} : vector<2x500xf32> to vector<1x499xf32>
    %181 = vector.broadcast %179 : vector<4x1xf32> to vector<4x499xf32>
    %182 = vector.broadcast %180 : vector<1x499xf32> to vector<4x499xf32>
    %183 = arith.mulf %181, %182 : vector<4x499xf32>
    %184 = arith.addf %177, %183 : vector<4x499xf32>
    %c4_80 = arith.constant 4 : index
    %c0_81 = arith.constant 0 : index
    %c0_82 = arith.constant 0 : index
    %185 = vector.load %arg1[%c4_80, %c0_81, %c0_82] : memref<10x4x1xf32, #tpu.memory_space<vmem>>, vector<1x4x1xf32>
    %186 = vector.shape_cast %185 : vector<1x4x1xf32> to vector<4x1xf32>
    %187 = vector.extract_strided_slice %1 {offsets = [0, 1], sizes = [1, 499], strides = [1, 1]} : vector<2x500xf32> to vector<1x499xf32>
    %188 = vector.broadcast %186 : vector<4x1xf32> to vector<4x499xf32>
    %189 = vector.broadcast %187 : vector<1x499xf32> to vector<4x499xf32>
    %190 = arith.mulf %188, %189 : vector<4x499xf32>
    %191 = arith.addf %184, %190 : vector<4x499xf32>
    %c5_83 = arith.constant 5 : index
    %c0_84 = arith.constant 0 : index
    %c0_85 = arith.constant 0 : index
    %192 = vector.load %arg1[%c5_83, %c0_84, %c0_85] : memref<10x4x1xf32, #tpu.memory_space<vmem>>, vector<1x4x1xf32>
    %193 = vector.shape_cast %192 : vector<1x4x1xf32> to vector<4x1xf32>
    %194 = vector.extract_strided_slice %1 {offsets = [1, 1], sizes = [1, 499], strides = [1, 1]} : vector<2x500xf32> to vector<1x499xf32>
    %195 = vector.broadcast %193 : vector<4x1xf32> to vector<4x499xf32>
    %196 = vector.broadcast %194 : vector<1x499xf32> to vector<4x499xf32>
    %197 = arith.mulf %195, %196 : vector<4x499xf32>
    %198 = arith.addf %191, %197 : vector<4x499xf32>
    %c6_86 = arith.constant 6 : index
    %c0_87 = arith.constant 0 : index
    %c0_88 = arith.constant 0 : index
    %199 = vector.load %arg1[%c6_86, %c0_87, %c0_88] : memref<10x4x1xf32, #tpu.memory_space<vmem>>, vector<1x4x1xf32>
    %200 = vector.shape_cast %199 : vector<1x4x1xf32> to vector<4x1xf32>
    %201 = vector.extract_strided_slice %3 {offsets = [0, 1], sizes = [1, 499], strides = [1, 1]} : vector<2x500xf32> to vector<1x499xf32>
    %202 = vector.broadcast %200 : vector<4x1xf32> to vector<4x499xf32>
    %203 = vector.broadcast %201 : vector<1x499xf32> to vector<4x499xf32>
    %204 = arith.mulf %202, %203 : vector<4x499xf32>
    %205 = arith.addf %198, %204 : vector<4x499xf32>
    %c7_89 = arith.constant 7 : index
    %c0_90 = arith.constant 0 : index
    %c0_91 = arith.constant 0 : index
    %206 = vector.load %arg1[%c7_89, %c0_90, %c0_91] : memref<10x4x1xf32, #tpu.memory_space<vmem>>, vector<1x4x1xf32>
    %207 = vector.shape_cast %206 : vector<1x4x1xf32> to vector<4x1xf32>
    %208 = vector.extract_strided_slice %3 {offsets = [1, 1], sizes = [1, 499], strides = [1, 1]} : vector<2x500xf32> to vector<1x499xf32>
    %209 = vector.broadcast %207 : vector<4x1xf32> to vector<4x499xf32>
    %210 = vector.broadcast %208 : vector<1x499xf32> to vector<4x499xf32>
    %211 = arith.mulf %209, %210 : vector<4x499xf32>
    %212 = arith.addf %205, %211 : vector<4x499xf32>
    %c8_92 = arith.constant 8 : index
    %c0_93 = arith.constant 0 : index
    %c0_94 = arith.constant 0 : index
    %213 = vector.load %arg1[%c8_92, %c0_93, %c0_94] : memref<10x4x1xf32, #tpu.memory_space<vmem>>, vector<1x4x1xf32>
    %214 = vector.shape_cast %213 : vector<1x4x1xf32> to vector<4x1xf32>
    %215 = vector.extract_strided_slice %5 {offsets = [0, 1], sizes = [1, 499], strides = [1, 1]} : vector<2x500xf32> to vector<1x499xf32>
    %216 = vector.broadcast %214 : vector<4x1xf32> to vector<4x499xf32>
    %217 = vector.broadcast %215 : vector<1x499xf32> to vector<4x499xf32>
    %218 = arith.mulf %216, %217 : vector<4x499xf32>
    %219 = arith.addf %212, %218 : vector<4x499xf32>
    %c9_95 = arith.constant 9 : index
    %c0_96 = arith.constant 0 : index
    %c0_97 = arith.constant 0 : index
    %220 = vector.load %arg1[%c9_95, %c0_96, %c0_97] : memref<10x4x1xf32, #tpu.memory_space<vmem>>, vector<1x4x1xf32>
    %221 = vector.shape_cast %220 : vector<1x4x1xf32> to vector<4x1xf32>
    %222 = vector.extract_strided_slice %5 {offsets = [1, 1], sizes = [1, 499], strides = [1, 1]} : vector<2x500xf32> to vector<1x499xf32>
    %223 = vector.broadcast %221 : vector<4x1xf32> to vector<4x499xf32>
    %224 = vector.broadcast %222 : vector<1x499xf32> to vector<4x499xf32>
    %225 = arith.mulf %223, %224 : vector<4x499xf32>
    %226 = arith.addf %219, %225 : vector<4x499xf32>
    %227 = vector.broadcast %8 : vector<4x1xf32> to vector<4x499xf32>
    %228 = arith.addf %226, %227 : vector<4x499xf32>
    %cst_98 = arith.constant 0.000000e+00 : f32
    %229 = vector.broadcast %cst_98 : f32 to vector<4x499xf32>
    %c0_99 = arith.constant 0 : index
    %c0_100 = arith.constant 0 : index
    %c0_101 = arith.constant 0 : index
    %230 = vector.load %arg1[%c0_99, %c0_100, %c0_101] : memref<10x4x1xf32, #tpu.memory_space<vmem>>, vector<1x4x1xf32>
    %231 = vector.shape_cast %230 : vector<1x4x1xf32> to vector<4x1xf32>
    %232 = vector.extract_strided_slice %7 {offsets = [0, 0], sizes = [1, 499], strides = [1, 1]} : vector<2x500xf32> to vector<1x499xf32>
    %233 = vector.broadcast %231 : vector<4x1xf32> to vector<4x499xf32>
    %234 = vector.broadcast %232 : vector<1x499xf32> to vector<4x499xf32>
    %235 = arith.mulf %233, %234 : vector<4x499xf32>
    %236 = arith.addf %229, %235 : vector<4x499xf32>
    %c1_102 = arith.constant 1 : index
    %c0_103 = arith.constant 0 : index
    %c0_104 = arith.constant 0 : index
    %237 = vector.load %arg1[%c1_102, %c0_103, %c0_104] : memref<10x4x1xf32, #tpu.memory_space<vmem>>, vector<1x4x1xf32>
    %238 = vector.shape_cast %237 : vector<1x4x1xf32> to vector<4x1xf32>
    %239 = vector.extract_strided_slice %7 {offsets = [1, 0], sizes = [1, 499], strides = [1, 1]} : vector<2x500xf32> to vector<1x499xf32>
    %240 = vector.broadcast %238 : vector<4x1xf32> to vector<4x499xf32>
    %241 = vector.broadcast %239 : vector<1x499xf32> to vector<4x499xf32>
    %242 = arith.mulf %240, %241 : vector<4x499xf32>
    %243 = arith.addf %236, %242 : vector<4x499xf32>
    %c2_105 = arith.constant 2 : index
    %c0_106 = arith.constant 0 : index
    %c0_107 = arith.constant 0 : index
    %244 = vector.load %arg1[%c2_105, %c0_106, %c0_107] : memref<10x4x1xf32, #tpu.memory_space<vmem>>, vector<1x4x1xf32>
    %245 = vector.shape_cast %244 : vector<1x4x1xf32> to vector<4x1xf32>
    %246 = vector.extract_strided_slice %1 {offsets = [0, 1], sizes = [1, 499], strides = [1, 1]} : vector<2x500xf32> to vector<1x499xf32>
    %247 = vector.broadcast %245 : vector<4x1xf32> to vector<4x499xf32>
    %248 = vector.broadcast %246 : vector<1x499xf32> to vector<4x499xf32>
    %249 = arith.mulf %247, %248 : vector<4x499xf32>
    %250 = arith.addf %243, %249 : vector<4x499xf32>
    %c3_108 = arith.constant 3 : index
    %c0_109 = arith.constant 0 : index
    %c0_110 = arith.constant 0 : index
    %251 = vector.load %arg1[%c3_108, %c0_109, %c0_110] : memref<10x4x1xf32, #tpu.memory_space<vmem>>, vector<1x4x1xf32>
    %252 = vector.shape_cast %251 : vector<1x4x1xf32> to vector<4x1xf32>
    %253 = vector.extract_strided_slice %1 {offsets = [1, 1], sizes = [1, 499], strides = [1, 1]} : vector<2x500xf32> to vector<1x499xf32>
    %254 = vector.broadcast %252 : vector<4x1xf32> to vector<4x499xf32>
    %255 = vector.broadcast %253 : vector<1x499xf32> to vector<4x499xf32>
    %256 = arith.mulf %254, %255 : vector<4x499xf32>
    %257 = arith.addf %250, %256 : vector<4x499xf32>
    %c4_111 = arith.constant 4 : index
    %c0_112 = arith.constant 0 : index
    %c0_113 = arith.constant 0 : index
    %258 = vector.load %arg1[%c4_111, %c0_112, %c0_113] : memref<10x4x1xf32, #tpu.memory_space<vmem>>, vector<1x4x1xf32>
    %259 = vector.shape_cast %258 : vector<1x4x1xf32> to vector<4x1xf32>
    %260 = vector.extract_strided_slice %3 {offsets = [0, 1], sizes = [1, 499], strides = [1, 1]} : vector<2x500xf32> to vector<1x499xf32>
    %261 = vector.broadcast %259 : vector<4x1xf32> to vector<4x499xf32>
    %262 = vector.broadcast %260 : vector<1x499xf32> to vector<4x499xf32>
    %263 = arith.mulf %261, %262 : vector<4x499xf32>
    %264 = arith.addf %257, %263 : vector<4x499xf32>
    %c5_114 = arith.constant 5 : index
    %c0_115 = arith.constant 0 : index
    %c0_116 = arith.constant 0 : index
    %265 = vector.load %arg1[%c5_114, %c0_115, %c0_116] : memref<10x4x1xf32, #tpu.memory_space<vmem>>, vector<1x4x1xf32>
    %266 = vector.shape_cast %265 : vector<1x4x1xf32> to vector<4x1xf32>
    %267 = vector.extract_strided_slice %3 {offsets = [1, 1], sizes = [1, 499], strides = [1, 1]} : vector<2x500xf32> to vector<1x499xf32>
    %268 = vector.broadcast %266 : vector<4x1xf32> to vector<4x499xf32>
    %269 = vector.broadcast %267 : vector<1x499xf32> to vector<4x499xf32>
    %270 = arith.mulf %268, %269 : vector<4x499xf32>
    %271 = arith.addf %264, %270 : vector<4x499xf32>
    %c6_117 = arith.constant 6 : index
    %c0_118 = arith.constant 0 : index
    %c0_119 = arith.constant 0 : index
    %272 = vector.load %arg1[%c6_117, %c0_118, %c0_119] : memref<10x4x1xf32, #tpu.memory_space<vmem>>, vector<1x4x1xf32>
    %273 = vector.shape_cast %272 : vector<1x4x1xf32> to vector<4x1xf32>
    %274 = vector.extract_strided_slice %5 {offsets = [0, 1], sizes = [1, 499], strides = [1, 1]} : vector<2x500xf32> to vector<1x499xf32>
    %275 = vector.broadcast %273 : vector<4x1xf32> to vector<4x499xf32>
    %276 = vector.broadcast %274 : vector<1x499xf32> to vector<4x499xf32>
    %277 = arith.mulf %275, %276 : vector<4x499xf32>
    %278 = arith.addf %271, %277 : vector<4x499xf32>
    %c7_120 = arith.constant 7 : index
    %c0_121 = arith.constant 0 : index
    %c0_122 = arith.constant 0 : index
    %279 = vector.load %arg1[%c7_120, %c0_121, %c0_122] : memref<10x4x1xf32, #tpu.memory_space<vmem>>, vector<1x4x1xf32>
    %280 = vector.shape_cast %279 : vector<1x4x1xf32> to vector<4x1xf32>
    %281 = vector.extract_strided_slice %5 {offsets = [1, 1], sizes = [1, 499], strides = [1, 1]} : vector<2x500xf32> to vector<1x499xf32>
    %282 = vector.broadcast %280 : vector<4x1xf32> to vector<4x499xf32>
    %283 = vector.broadcast %281 : vector<1x499xf32> to vector<4x499xf32>
    %284 = arith.mulf %282, %283 : vector<4x499xf32>
    %285 = arith.addf %278, %284 : vector<4x499xf32>
    %c8_123 = arith.constant 8 : index
    %c0_124 = arith.constant 0 : index
    %c0_125 = arith.constant 0 : index
    %286 = vector.load %arg1[%c8_123, %c0_124, %c0_125] : memref<10x4x1xf32, #tpu.memory_space<vmem>>, vector<1x4x1xf32>
    %287 = vector.shape_cast %286 : vector<1x4x1xf32> to vector<4x1xf32>
    %288 = vector.extract_strided_slice %7 {offsets = [0, 1], sizes = [1, 499], strides = [1, 1]} : vector<2x500xf32> to vector<1x499xf32>
    %289 = vector.broadcast %287 : vector<4x1xf32> to vector<4x499xf32>
    %290 = vector.broadcast %288 : vector<1x499xf32> to vector<4x499xf32>
    %291 = arith.mulf %289, %290 : vector<4x499xf32>
    %292 = arith.addf %285, %291 : vector<4x499xf32>
    %c9_126 = arith.constant 9 : index
    %c0_127 = arith.constant 0 : index
    %c0_128 = arith.constant 0 : index
    %293 = vector.load %arg1[%c9_126, %c0_127, %c0_128] : memref<10x4x1xf32, #tpu.memory_space<vmem>>, vector<1x4x1xf32>
    %294 = vector.shape_cast %293 : vector<1x4x1xf32> to vector<4x1xf32>
    %295 = vector.extract_strided_slice %7 {offsets = [1, 1], sizes = [1, 499], strides = [1, 1]} : vector<2x500xf32> to vector<1x499xf32>
    %296 = vector.broadcast %294 : vector<4x1xf32> to vector<4x499xf32>
    %297 = vector.broadcast %295 : vector<1x499xf32> to vector<4x499xf32>
    %298 = arith.mulf %296, %297 : vector<4x499xf32>
    %299 = arith.addf %292, %298 : vector<4x499xf32>
    %300 = vector.broadcast %8 : vector<4x1xf32> to vector<4x499xf32>
    %301 = arith.addf %299, %300 : vector<4x499xf32>
    %302 = vector.extract_strided_slice %82 {offsets = [0, 0], sizes = [4, 498], strides = [1, 1]} : vector<4x499xf32> to vector<4x498xf32>
    %303 = vector.extract_strided_slice %155 {offsets = [0, 0], sizes = [4, 498], strides = [1, 1]} : vector<4x499xf32> to vector<4x498xf32>
    %304 = vector.extract_strided_slice %228 {offsets = [0, 0], sizes = [4, 498], strides = [1, 1]} : vector<4x499xf32> to vector<4x498xf32>
    %305 = vector.extract_strided_slice %301 {offsets = [0, 0], sizes = [4, 498], strides = [1, 1]} : vector<4x499xf32> to vector<4x498xf32>
    %306 = vector.extract_strided_slice %82 {offsets = [0, 1], sizes = [4, 498], strides = [1, 1]} : vector<4x499xf32> to vector<4x498xf32>
    %307 = arith.maximumf %302, %303 : vector<4x498xf32>
    %308 = arith.maximumf %304, %305 : vector<4x498xf32>
    %309 = arith.maximumf %307, %308 : vector<4x498xf32>
    %310 = arith.maximumf %309, %306 : vector<4x498xf32>
    %311 = vector.extract_strided_slice %228 {offsets = [0, 0], sizes = [4, 498], strides = [1, 1]} : vector<4x499xf32> to vector<4x498xf32>
    %312 = vector.extract_strided_slice %301 {offsets = [0, 0], sizes = [4, 498], strides = [1, 1]} : vector<4x499xf32> to vector<4x498xf32>
    %313 = vector.extract_strided_slice %82 {offsets = [0, 1], sizes = [4, 498], strides = [1, 1]} : vector<4x499xf32> to vector<4x498xf32>
    %314 = vector.extract_strided_slice %155 {offsets = [0, 1], sizes = [4, 498], strides = [1, 1]} : vector<4x499xf32> to vector<4x498xf32>
    %315 = vector.extract_strided_slice %228 {offsets = [0, 1], sizes = [4, 498], strides = [1, 1]} : vector<4x499xf32> to vector<4x498xf32>
    %316 = arith.maximumf %311, %312 : vector<4x498xf32>
    %317 = arith.maximumf %313, %314 : vector<4x498xf32>
    %318 = arith.maximumf %316, %317 : vector<4x498xf32>
    %319 = arith.maximumf %318, %315 : vector<4x498xf32>
    %cst_129 = arith.constant 0.000000e+00 : f32
    %320 = vector.broadcast %cst_129 : f32 to vector<6x496xf32>
    %c0_130 = arith.constant 0 : index
    %c0_131 = arith.constant 0 : index
    %c0_132 = arith.constant 0 : index
    %321 = vector.load %arg3[%c0_130, %c0_131, %c0_132] : memref<20x6x1xf32, #tpu.memory_space<vmem>>, vector<1x6x1xf32>
    %322 = vector.shape_cast %321 : vector<1x6x1xf32> to vector<6x1xf32>
    %323 = vector.extract_strided_slice %310 {offsets = [0, 0], sizes = [1, 496], strides = [1, 1]} : vector<4x498xf32> to vector<1x496xf32>
    %324 = vector.broadcast %322 : vector<6x1xf32> to vector<6x496xf32>
    %325 = vector.broadcast %323 : vector<1x496xf32> to vector<6x496xf32>
    %326 = arith.mulf %324, %325 : vector<6x496xf32>
    %327 = arith.addf %320, %326 : vector<6x496xf32>
    %c1_133 = arith.constant 1 : index
    %c0_134 = arith.constant 0 : index
    %c0_135 = arith.constant 0 : index
    %328 = vector.load %arg3[%c1_133, %c0_134, %c0_135] : memref<20x6x1xf32, #tpu.memory_space<vmem>>, vector<1x6x1xf32>
    %329 = vector.shape_cast %328 : vector<1x6x1xf32> to vector<6x1xf32>
    %330 = vector.extract_strided_slice %310 {offsets = [1, 0], sizes = [1, 496], strides = [1, 1]} : vector<4x498xf32> to vector<1x496xf32>
    %331 = vector.broadcast %329 : vector<6x1xf32> to vector<6x496xf32>
    %332 = vector.broadcast %330 : vector<1x496xf32> to vector<6x496xf32>
    %333 = arith.mulf %331, %332 : vector<6x496xf32>
    %334 = arith.addf %327, %333 : vector<6x496xf32>
    %c2_136 = arith.constant 2 : index
    %c0_137 = arith.constant 0 : index
    %c0_138 = arith.constant 0 : index
    %335 = vector.load %arg3[%c2_136, %c0_137, %c0_138] : memref<20x6x1xf32, #tpu.memory_space<vmem>>, vector<1x6x1xf32>
    %336 = vector.shape_cast %335 : vector<1x6x1xf32> to vector<6x1xf32>
    %337 = vector.extract_strided_slice %310 {offsets = [2, 0], sizes = [1, 496], strides = [1, 1]} : vector<4x498xf32> to vector<1x496xf32>
    %338 = vector.broadcast %336 : vector<6x1xf32> to vector<6x496xf32>
    %339 = vector.broadcast %337 : vector<1x496xf32> to vector<6x496xf32>
    %340 = arith.mulf %338, %339 : vector<6x496xf32>
    %341 = arith.addf %334, %340 : vector<6x496xf32>
    %c3_139 = arith.constant 3 : index
    %c0_140 = arith.constant 0 : index
    %c0_141 = arith.constant 0 : index
    %342 = vector.load %arg3[%c3_139, %c0_140, %c0_141] : memref<20x6x1xf32, #tpu.memory_space<vmem>>, vector<1x6x1xf32>
    %343 = vector.shape_cast %342 : vector<1x6x1xf32> to vector<6x1xf32>
    %344 = vector.extract_strided_slice %310 {offsets = [3, 0], sizes = [1, 496], strides = [1, 1]} : vector<4x498xf32> to vector<1x496xf32>
    %345 = vector.broadcast %343 : vector<6x1xf32> to vector<6x496xf32>
    %346 = vector.broadcast %344 : vector<1x496xf32> to vector<6x496xf32>
    %347 = arith.mulf %345, %346 : vector<6x496xf32>
    %348 = arith.addf %341, %347 : vector<6x496xf32>
    %c4_142 = arith.constant 4 : index
    %c0_143 = arith.constant 0 : index
    %c0_144 = arith.constant 0 : index
    %349 = vector.load %arg3[%c4_142, %c0_143, %c0_144] : memref<20x6x1xf32, #tpu.memory_space<vmem>>, vector<1x6x1xf32>
    %350 = vector.shape_cast %349 : vector<1x6x1xf32> to vector<6x1xf32>
    %351 = vector.extract_strided_slice %319 {offsets = [0, 0], sizes = [1, 496], strides = [1, 1]} : vector<4x498xf32> to vector<1x496xf32>
    %352 = vector.broadcast %350 : vector<6x1xf32> to vector<6x496xf32>
    %353 = vector.broadcast %351 : vector<1x496xf32> to vector<6x496xf32>
    %354 = arith.mulf %352, %353 : vector<6x496xf32>
    %355 = arith.addf %348, %354 : vector<6x496xf32>
    %c5_145 = arith.constant 5 : index
    %c0_146 = arith.constant 0 : index
    %c0_147 = arith.constant 0 : index
    %356 = vector.load %arg3[%c5_145, %c0_146, %c0_147] : memref<20x6x1xf32, #tpu.memory_space<vmem>>, vector<1x6x1xf32>
    %357 = vector.shape_cast %356 : vector<1x6x1xf32> to vector<6x1xf32>
    %358 = vector.extract_strided_slice %319 {offsets = [1, 0], sizes = [1, 496], strides = [1, 1]} : vector<4x498xf32> to vector<1x496xf32>
    %359 = vector.broadcast %357 : vector<6x1xf32> to vector<6x496xf32>
    %360 = vector.broadcast %358 : vector<1x496xf32> to vector<6x496xf32>
    %361 = arith.mulf %359, %360 : vector<6x496xf32>
    %362 = arith.addf %355, %361 : vector<6x496xf32>
    %c6_148 = arith.constant 6 : index
    %c0_149 = arith.constant 0 : index
    %c0_150 = arith.constant 0 : index
    %363 = vector.load %arg3[%c6_148, %c0_149, %c0_150] : memref<20x6x1xf32, #tpu.memory_space<vmem>>, vector<1x6x1xf32>
    %364 = vector.shape_cast %363 : vector<1x6x1xf32> to vector<6x1xf32>
    %365 = vector.extract_strided_slice %319 {offsets = [2, 0], sizes = [1, 496], strides = [1, 1]} : vector<4x498xf32> to vector<1x496xf32>
    %366 = vector.broadcast %364 : vector<6x1xf32> to vector<6x496xf32>
    %367 = vector.broadcast %365 : vector<1x496xf32> to vector<6x496xf32>
    %368 = arith.mulf %366, %367 : vector<6x496xf32>
    %369 = arith.addf %362, %368 : vector<6x496xf32>
    %c7_151 = arith.constant 7 : index
    %c0_152 = arith.constant 0 : index
    %c0_153 = arith.constant 0 : index
    %370 = vector.load %arg3[%c7_151, %c0_152, %c0_153] : memref<20x6x1xf32, #tpu.memory_space<vmem>>, vector<1x6x1xf32>
    %371 = vector.shape_cast %370 : vector<1x6x1xf32> to vector<6x1xf32>
    %372 = vector.extract_strided_slice %319 {offsets = [3, 0], sizes = [1, 496], strides = [1, 1]} : vector<4x498xf32> to vector<1x496xf32>
    %373 = vector.broadcast %371 : vector<6x1xf32> to vector<6x496xf32>
    %374 = vector.broadcast %372 : vector<1x496xf32> to vector<6x496xf32>
    %375 = arith.mulf %373, %374 : vector<6x496xf32>
    %376 = arith.addf %369, %375 : vector<6x496xf32>
    %c8_154 = arith.constant 8 : index
    %c0_155 = arith.constant 0 : index
    %c0_156 = arith.constant 0 : index
    %377 = vector.load %arg3[%c8_154, %c0_155, %c0_156] : memref<20x6x1xf32, #tpu.memory_space<vmem>>, vector<1x6x1xf32>
    %378 = vector.shape_cast %377 : vector<1x6x1xf32> to vector<6x1xf32>
    %379 = vector.extract_strided_slice %310 {offsets = [0, 1], sizes = [1, 496], strides = [1, 1]} : vector<4x498xf32> to vector<1x496xf32>
    %380 = vector.broadcast %378 : vector<6x1xf32> to vector<6x496xf32>
    %381 = vector.broadcast %379 : vector<1x496xf32> to vector<6x496xf32>
    %382 = arith.mulf %380, %381 : vector<6x496xf32>
    %383 = arith.addf %376, %382 : vector<6x496xf32>
    %c9_157 = arith.constant 9 : index
    %c0_158 = arith.constant 0 : index
    %c0_159 = arith.constant 0 : index
    %384 = vector.load %arg3[%c9_157, %c0_158, %c0_159] : memref<20x6x1xf32, #tpu.memory_space<vmem>>, vector<1x6x1xf32>
    %385 = vector.shape_cast %384 : vector<1x6x1xf32> to vector<6x1xf32>
    %386 = vector.extract_strided_slice %310 {offsets = [1, 1], sizes = [1, 496], strides = [1, 1]} : vector<4x498xf32> to vector<1x496xf32>
    %387 = vector.broadcast %385 : vector<6x1xf32> to vector<6x496xf32>
    %388 = vector.broadcast %386 : vector<1x496xf32> to vector<6x496xf32>
    %389 = arith.mulf %387, %388 : vector<6x496xf32>
    %390 = arith.addf %383, %389 : vector<6x496xf32>
    %c10 = arith.constant 10 : index
    %c0_160 = arith.constant 0 : index
    %c0_161 = arith.constant 0 : index
    %391 = vector.load %arg3[%c10, %c0_160, %c0_161] : memref<20x6x1xf32, #tpu.memory_space<vmem>>, vector<1x6x1xf32>
    %392 = vector.shape_cast %391 : vector<1x6x1xf32> to vector<6x1xf32>
    %393 = vector.extract_strided_slice %310 {offsets = [2, 1], sizes = [1, 496], strides = [1, 1]} : vector<4x498xf32> to vector<1x496xf32>
    %394 = vector.broadcast %392 : vector<6x1xf32> to vector<6x496xf32>
    %395 = vector.broadcast %393 : vector<1x496xf32> to vector<6x496xf32>
    %396 = arith.mulf %394, %395 : vector<6x496xf32>
    %397 = arith.addf %390, %396 : vector<6x496xf32>
    %c11 = arith.constant 11 : index
    %c0_162 = arith.constant 0 : index
    %c0_163 = arith.constant 0 : index
    %398 = vector.load %arg3[%c11, %c0_162, %c0_163] : memref<20x6x1xf32, #tpu.memory_space<vmem>>, vector<1x6x1xf32>
    %399 = vector.shape_cast %398 : vector<1x6x1xf32> to vector<6x1xf32>
    %400 = vector.extract_strided_slice %310 {offsets = [3, 1], sizes = [1, 496], strides = [1, 1]} : vector<4x498xf32> to vector<1x496xf32>
    %401 = vector.broadcast %399 : vector<6x1xf32> to vector<6x496xf32>
    %402 = vector.broadcast %400 : vector<1x496xf32> to vector<6x496xf32>
    %403 = arith.mulf %401, %402 : vector<6x496xf32>
    %404 = arith.addf %397, %403 : vector<6x496xf32>
    %c12 = arith.constant 12 : index
    %c0_164 = arith.constant 0 : index
    %c0_165 = arith.constant 0 : index
    %405 = vector.load %arg3[%c12, %c0_164, %c0_165] : memref<20x6x1xf32, #tpu.memory_space<vmem>>, vector<1x6x1xf32>
    %406 = vector.shape_cast %405 : vector<1x6x1xf32> to vector<6x1xf32>
    %407 = vector.extract_strided_slice %319 {offsets = [0, 1], sizes = [1, 496], strides = [1, 1]} : vector<4x498xf32> to vector<1x496xf32>
    %408 = vector.broadcast %406 : vector<6x1xf32> to vector<6x496xf32>
    %409 = vector.broadcast %407 : vector<1x496xf32> to vector<6x496xf32>
    %410 = arith.mulf %408, %409 : vector<6x496xf32>
    %411 = arith.addf %404, %410 : vector<6x496xf32>
    %c13 = arith.constant 13 : index
    %c0_166 = arith.constant 0 : index
    %c0_167 = arith.constant 0 : index
    %412 = vector.load %arg3[%c13, %c0_166, %c0_167] : memref<20x6x1xf32, #tpu.memory_space<vmem>>, vector<1x6x1xf32>
    %413 = vector.shape_cast %412 : vector<1x6x1xf32> to vector<6x1xf32>
    %414 = vector.extract_strided_slice %319 {offsets = [1, 1], sizes = [1, 496], strides = [1, 1]} : vector<4x498xf32> to vector<1x496xf32>
    %415 = vector.broadcast %413 : vector<6x1xf32> to vector<6x496xf32>
    %416 = vector.broadcast %414 : vector<1x496xf32> to vector<6x496xf32>
    %417 = arith.mulf %415, %416 : vector<6x496xf32>
    %418 = arith.addf %411, %417 : vector<6x496xf32>
    %c14 = arith.constant 14 : index
    %c0_168 = arith.constant 0 : index
    %c0_169 = arith.constant 0 : index
    %419 = vector.load %arg3[%c14, %c0_168, %c0_169] : memref<20x6x1xf32, #tpu.memory_space<vmem>>, vector<1x6x1xf32>
    %420 = vector.shape_cast %419 : vector<1x6x1xf32> to vector<6x1xf32>
    %421 = vector.extract_strided_slice %319 {offsets = [2, 1], sizes = [1, 496], strides = [1, 1]} : vector<4x498xf32> to vector<1x496xf32>
    %422 = vector.broadcast %420 : vector<6x1xf32> to vector<6x496xf32>
    %423 = vector.broadcast %421 : vector<1x496xf32> to vector<6x496xf32>
    %424 = arith.mulf %422, %423 : vector<6x496xf32>
    %425 = arith.addf %418, %424 : vector<6x496xf32>
    %c15 = arith.constant 15 : index
    %c0_170 = arith.constant 0 : index
    %c0_171 = arith.constant 0 : index
    %426 = vector.load %arg3[%c15, %c0_170, %c0_171] : memref<20x6x1xf32, #tpu.memory_space<vmem>>, vector<1x6x1xf32>
    %427 = vector.shape_cast %426 : vector<1x6x1xf32> to vector<6x1xf32>
    %428 = vector.extract_strided_slice %319 {offsets = [3, 1], sizes = [1, 496], strides = [1, 1]} : vector<4x498xf32> to vector<1x496xf32>
    %429 = vector.broadcast %427 : vector<6x1xf32> to vector<6x496xf32>
    %430 = vector.broadcast %428 : vector<1x496xf32> to vector<6x496xf32>
    %431 = arith.mulf %429, %430 : vector<6x496xf32>
    %432 = arith.addf %425, %431 : vector<6x496xf32>
    %c16 = arith.constant 16 : index
    %c0_172 = arith.constant 0 : index
    %c0_173 = arith.constant 0 : index
    %433 = vector.load %arg3[%c16, %c0_172, %c0_173] : memref<20x6x1xf32, #tpu.memory_space<vmem>>, vector<1x6x1xf32>
    %434 = vector.shape_cast %433 : vector<1x6x1xf32> to vector<6x1xf32>
    %435 = vector.extract_strided_slice %310 {offsets = [0, 2], sizes = [1, 496], strides = [1, 1]} : vector<4x498xf32> to vector<1x496xf32>
    %436 = vector.broadcast %434 : vector<6x1xf32> to vector<6x496xf32>
    %437 = vector.broadcast %435 : vector<1x496xf32> to vector<6x496xf32>
    %438 = arith.mulf %436, %437 : vector<6x496xf32>
    %439 = arith.addf %432, %438 : vector<6x496xf32>
    %c17 = arith.constant 17 : index
    %c0_174 = arith.constant 0 : index
    %c0_175 = arith.constant 0 : index
    %440 = vector.load %arg3[%c17, %c0_174, %c0_175] : memref<20x6x1xf32, #tpu.memory_space<vmem>>, vector<1x6x1xf32>
    %441 = vector.shape_cast %440 : vector<1x6x1xf32> to vector<6x1xf32>
    %442 = vector.extract_strided_slice %310 {offsets = [1, 2], sizes = [1, 496], strides = [1, 1]} : vector<4x498xf32> to vector<1x496xf32>
    %443 = vector.broadcast %441 : vector<6x1xf32> to vector<6x496xf32>
    %444 = vector.broadcast %442 : vector<1x496xf32> to vector<6x496xf32>
    %445 = arith.mulf %443, %444 : vector<6x496xf32>
    %446 = arith.addf %439, %445 : vector<6x496xf32>
    %c18 = arith.constant 18 : index
    %c0_176 = arith.constant 0 : index
    %c0_177 = arith.constant 0 : index
    %447 = vector.load %arg3[%c18, %c0_176, %c0_177] : memref<20x6x1xf32, #tpu.memory_space<vmem>>, vector<1x6x1xf32>
    %448 = vector.shape_cast %447 : vector<1x6x1xf32> to vector<6x1xf32>
    %449 = vector.extract_strided_slice %310 {offsets = [2, 2], sizes = [1, 496], strides = [1, 1]} : vector<4x498xf32> to vector<1x496xf32>
    %450 = vector.broadcast %448 : vector<6x1xf32> to vector<6x496xf32>
    %451 = vector.broadcast %449 : vector<1x496xf32> to vector<6x496xf32>
    %452 = arith.mulf %450, %451 : vector<6x496xf32>
    %453 = arith.addf %446, %452 : vector<6x496xf32>
    %c19 = arith.constant 19 : index
    %c0_178 = arith.constant 0 : index
    %c0_179 = arith.constant 0 : index
    %454 = vector.load %arg3[%c19, %c0_178, %c0_179] : memref<20x6x1xf32, #tpu.memory_space<vmem>>, vector<1x6x1xf32>
    %455 = vector.shape_cast %454 : vector<1x6x1xf32> to vector<6x1xf32>
    %456 = vector.extract_strided_slice %310 {offsets = [3, 2], sizes = [1, 496], strides = [1, 1]} : vector<4x498xf32> to vector<1x496xf32>
    %457 = vector.broadcast %455 : vector<6x1xf32> to vector<6x496xf32>
    %458 = vector.broadcast %456 : vector<1x496xf32> to vector<6x496xf32>
    %459 = arith.mulf %457, %458 : vector<6x496xf32>
    %460 = arith.addf %453, %459 : vector<6x496xf32>
    %461 = vector.broadcast %9 : vector<6x1xf32> to vector<6x496xf32>
    %462 = arith.addf %460, %461 : vector<6x496xf32>
    %cst_180 = arith.constant 0.000000e+00 : f32
    %463 = vector.broadcast %cst_180 : f32 to vector<6x496xf32>
    %c0_181 = arith.constant 0 : index
    %c0_182 = arith.constant 0 : index
    %c0_183 = arith.constant 0 : index
    %464 = vector.load %arg3[%c0_181, %c0_182, %c0_183] : memref<20x6x1xf32, #tpu.memory_space<vmem>>, vector<1x6x1xf32>
    %465 = vector.shape_cast %464 : vector<1x6x1xf32> to vector<6x1xf32>
    %466 = vector.extract_strided_slice %319 {offsets = [0, 0], sizes = [1, 496], strides = [1, 1]} : vector<4x498xf32> to vector<1x496xf32>
    %467 = vector.broadcast %465 : vector<6x1xf32> to vector<6x496xf32>
    %468 = vector.broadcast %466 : vector<1x496xf32> to vector<6x496xf32>
    %469 = arith.mulf %467, %468 : vector<6x496xf32>
    %470 = arith.addf %463, %469 : vector<6x496xf32>
    %c1_184 = arith.constant 1 : index
    %c0_185 = arith.constant 0 : index
    %c0_186 = arith.constant 0 : index
    %471 = vector.load %arg3[%c1_184, %c0_185, %c0_186] : memref<20x6x1xf32, #tpu.memory_space<vmem>>, vector<1x6x1xf32>
    %472 = vector.shape_cast %471 : vector<1x6x1xf32> to vector<6x1xf32>
    %473 = vector.extract_strided_slice %319 {offsets = [1, 0], sizes = [1, 496], strides = [1, 1]} : vector<4x498xf32> to vector<1x496xf32>
    %474 = vector.broadcast %472 : vector<6x1xf32> to vector<6x496xf32>
    %475 = vector.broadcast %473 : vector<1x496xf32> to vector<6x496xf32>
    %476 = arith.mulf %474, %475 : vector<6x496xf32>
    %477 = arith.addf %470, %476 : vector<6x496xf32>
    %c2_187 = arith.constant 2 : index
    %c0_188 = arith.constant 0 : index
    %c0_189 = arith.constant 0 : index
    %478 = vector.load %arg3[%c2_187, %c0_188, %c0_189] : memref<20x6x1xf32, #tpu.memory_space<vmem>>, vector<1x6x1xf32>
    %479 = vector.shape_cast %478 : vector<1x6x1xf32> to vector<6x1xf32>
    %480 = vector.extract_strided_slice %319 {offsets = [2, 0], sizes = [1, 496], strides = [1, 1]} : vector<4x498xf32> to vector<1x496xf32>
    %481 = vector.broadcast %479 : vector<6x1xf32> to vector<6x496xf32>
    %482 = vector.broadcast %480 : vector<1x496xf32> to vector<6x496xf32>
    %483 = arith.mulf %481, %482 : vector<6x496xf32>
    %484 = arith.addf %477, %483 : vector<6x496xf32>
    %c3_190 = arith.constant 3 : index
    %c0_191 = arith.constant 0 : index
    %c0_192 = arith.constant 0 : index
    %485 = vector.load %arg3[%c3_190, %c0_191, %c0_192] : memref<20x6x1xf32, #tpu.memory_space<vmem>>, vector<1x6x1xf32>
    %486 = vector.shape_cast %485 : vector<1x6x1xf32> to vector<6x1xf32>
    %487 = vector.extract_strided_slice %319 {offsets = [3, 0], sizes = [1, 496], strides = [1, 1]} : vector<4x498xf32> to vector<1x496xf32>
    %488 = vector.broadcast %486 : vector<6x1xf32> to vector<6x496xf32>
    %489 = vector.broadcast %487 : vector<1x496xf32> to vector<6x496xf32>
    %490 = arith.mulf %488, %489 : vector<6x496xf32>
    %491 = arith.addf %484, %490 : vector<6x496xf32>
    %c4_193 = arith.constant 4 : index
    %c0_194 = arith.constant 0 : index
    %c0_195 = arith.constant 0 : index
    %492 = vector.load %arg3[%c4_193, %c0_194, %c0_195] : memref<20x6x1xf32, #tpu.memory_space<vmem>>, vector<1x6x1xf32>
    %493 = vector.shape_cast %492 : vector<1x6x1xf32> to vector<6x1xf32>
    %494 = vector.extract_strided_slice %310 {offsets = [0, 1], sizes = [1, 496], strides = [1, 1]} : vector<4x498xf32> to vector<1x496xf32>
    %495 = vector.broadcast %493 : vector<6x1xf32> to vector<6x496xf32>
    %496 = vector.broadcast %494 : vector<1x496xf32> to vector<6x496xf32>
    %497 = arith.mulf %495, %496 : vector<6x496xf32>
    %498 = arith.addf %491, %497 : vector<6x496xf32>
    %c5_196 = arith.constant 5 : index
    %c0_197 = arith.constant 0 : index
    %c0_198 = arith.constant 0 : index
    %499 = vector.load %arg3[%c5_196, %c0_197, %c0_198] : memref<20x6x1xf32, #tpu.memory_space<vmem>>, vector<1x6x1xf32>
    %500 = vector.shape_cast %499 : vector<1x6x1xf32> to vector<6x1xf32>
    %501 = vector.extract_strided_slice %310 {offsets = [1, 1], sizes = [1, 496], strides = [1, 1]} : vector<4x498xf32> to vector<1x496xf32>
    %502 = vector.broadcast %500 : vector<6x1xf32> to vector<6x496xf32>
    %503 = vector.broadcast %501 : vector<1x496xf32> to vector<6x496xf32>
    %504 = arith.mulf %502, %503 : vector<6x496xf32>
    %505 = arith.addf %498, %504 : vector<6x496xf32>
    %c6_199 = arith.constant 6 : index
    %c0_200 = arith.constant 0 : index
    %c0_201 = arith.constant 0 : index
    %506 = vector.load %arg3[%c6_199, %c0_200, %c0_201] : memref<20x6x1xf32, #tpu.memory_space<vmem>>, vector<1x6x1xf32>
    %507 = vector.shape_cast %506 : vector<1x6x1xf32> to vector<6x1xf32>
    %508 = vector.extract_strided_slice %310 {offsets = [2, 1], sizes = [1, 496], strides = [1, 1]} : vector<4x498xf32> to vector<1x496xf32>
    %509 = vector.broadcast %507 : vector<6x1xf32> to vector<6x496xf32>
    %510 = vector.broadcast %508 : vector<1x496xf32> to vector<6x496xf32>
    %511 = arith.mulf %509, %510 : vector<6x496xf32>
    %512 = arith.addf %505, %511 : vector<6x496xf32>
    %c7_202 = arith.constant 7 : index
    %c0_203 = arith.constant 0 : index
    %c0_204 = arith.constant 0 : index
    %513 = vector.load %arg3[%c7_202, %c0_203, %c0_204] : memref<20x6x1xf32, #tpu.memory_space<vmem>>, vector<1x6x1xf32>
    %514 = vector.shape_cast %513 : vector<1x6x1xf32> to vector<6x1xf32>
    %515 = vector.extract_strided_slice %310 {offsets = [3, 1], sizes = [1, 496], strides = [1, 1]} : vector<4x498xf32> to vector<1x496xf32>
    %516 = vector.broadcast %514 : vector<6x1xf32> to vector<6x496xf32>
    %517 = vector.broadcast %515 : vector<1x496xf32> to vector<6x496xf32>
    %518 = arith.mulf %516, %517 : vector<6x496xf32>
    %519 = arith.addf %512, %518 : vector<6x496xf32>
    %c8_205 = arith.constant 8 : index
    %c0_206 = arith.constant 0 : index
    %c0_207 = arith.constant 0 : index
    %520 = vector.load %arg3[%c8_205, %c0_206, %c0_207] : memref<20x6x1xf32, #tpu.memory_space<vmem>>, vector<1x6x1xf32>
    %521 = vector.shape_cast %520 : vector<1x6x1xf32> to vector<6x1xf32>
    %522 = vector.extract_strided_slice %319 {offsets = [0, 1], sizes = [1, 496], strides = [1, 1]} : vector<4x498xf32> to vector<1x496xf32>
    %523 = vector.broadcast %521 : vector<6x1xf32> to vector<6x496xf32>
    %524 = vector.broadcast %522 : vector<1x496xf32> to vector<6x496xf32>
    %525 = arith.mulf %523, %524 : vector<6x496xf32>
    %526 = arith.addf %519, %525 : vector<6x496xf32>
    %c9_208 = arith.constant 9 : index
    %c0_209 = arith.constant 0 : index
    %c0_210 = arith.constant 0 : index
    %527 = vector.load %arg3[%c9_208, %c0_209, %c0_210] : memref<20x6x1xf32, #tpu.memory_space<vmem>>, vector<1x6x1xf32>
    %528 = vector.shape_cast %527 : vector<1x6x1xf32> to vector<6x1xf32>
    %529 = vector.extract_strided_slice %319 {offsets = [1, 1], sizes = [1, 496], strides = [1, 1]} : vector<4x498xf32> to vector<1x496xf32>
    %530 = vector.broadcast %528 : vector<6x1xf32> to vector<6x496xf32>
    %531 = vector.broadcast %529 : vector<1x496xf32> to vector<6x496xf32>
    %532 = arith.mulf %530, %531 : vector<6x496xf32>
    %533 = arith.addf %526, %532 : vector<6x496xf32>
    %c10_211 = arith.constant 10 : index
    %c0_212 = arith.constant 0 : index
    %c0_213 = arith.constant 0 : index
    %534 = vector.load %arg3[%c10_211, %c0_212, %c0_213] : memref<20x6x1xf32, #tpu.memory_space<vmem>>, vector<1x6x1xf32>
    %535 = vector.shape_cast %534 : vector<1x6x1xf32> to vector<6x1xf32>
    %536 = vector.extract_strided_slice %319 {offsets = [2, 1], sizes = [1, 496], strides = [1, 1]} : vector<4x498xf32> to vector<1x496xf32>
    %537 = vector.broadcast %535 : vector<6x1xf32> to vector<6x496xf32>
    %538 = vector.broadcast %536 : vector<1x496xf32> to vector<6x496xf32>
    %539 = arith.mulf %537, %538 : vector<6x496xf32>
    %540 = arith.addf %533, %539 : vector<6x496xf32>
    %c11_214 = arith.constant 11 : index
    %c0_215 = arith.constant 0 : index
    %c0_216 = arith.constant 0 : index
    %541 = vector.load %arg3[%c11_214, %c0_215, %c0_216] : memref<20x6x1xf32, #tpu.memory_space<vmem>>, vector<1x6x1xf32>
    %542 = vector.shape_cast %541 : vector<1x6x1xf32> to vector<6x1xf32>
    %543 = vector.extract_strided_slice %319 {offsets = [3, 1], sizes = [1, 496], strides = [1, 1]} : vector<4x498xf32> to vector<1x496xf32>
    %544 = vector.broadcast %542 : vector<6x1xf32> to vector<6x496xf32>
    %545 = vector.broadcast %543 : vector<1x496xf32> to vector<6x496xf32>
    %546 = arith.mulf %544, %545 : vector<6x496xf32>
    %547 = arith.addf %540, %546 : vector<6x496xf32>
    %c12_217 = arith.constant 12 : index
    %c0_218 = arith.constant 0 : index
    %c0_219 = arith.constant 0 : index
    %548 = vector.load %arg3[%c12_217, %c0_218, %c0_219] : memref<20x6x1xf32, #tpu.memory_space<vmem>>, vector<1x6x1xf32>
    %549 = vector.shape_cast %548 : vector<1x6x1xf32> to vector<6x1xf32>
    %550 = vector.extract_strided_slice %310 {offsets = [0, 2], sizes = [1, 496], strides = [1, 1]} : vector<4x498xf32> to vector<1x496xf32>
    %551 = vector.broadcast %549 : vector<6x1xf32> to vector<6x496xf32>
    %552 = vector.broadcast %550 : vector<1x496xf32> to vector<6x496xf32>
    %553 = arith.mulf %551, %552 : vector<6x496xf32>
    %554 = arith.addf %547, %553 : vector<6x496xf32>
    %c13_220 = arith.constant 13 : index
    %c0_221 = arith.constant 0 : index
    %c0_222 = arith.constant 0 : index
    %555 = vector.load %arg3[%c13_220, %c0_221, %c0_222] : memref<20x6x1xf32, #tpu.memory_space<vmem>>, vector<1x6x1xf32>
    %556 = vector.shape_cast %555 : vector<1x6x1xf32> to vector<6x1xf32>
    %557 = vector.extract_strided_slice %310 {offsets = [1, 2], sizes = [1, 496], strides = [1, 1]} : vector<4x498xf32> to vector<1x496xf32>
    %558 = vector.broadcast %556 : vector<6x1xf32> to vector<6x496xf32>
    %559 = vector.broadcast %557 : vector<1x496xf32> to vector<6x496xf32>
    %560 = arith.mulf %558, %559 : vector<6x496xf32>
    %561 = arith.addf %554, %560 : vector<6x496xf32>
    %c14_223 = arith.constant 14 : index
    %c0_224 = arith.constant 0 : index
    %c0_225 = arith.constant 0 : index
    %562 = vector.load %arg3[%c14_223, %c0_224, %c0_225] : memref<20x6x1xf32, #tpu.memory_space<vmem>>, vector<1x6x1xf32>
    %563 = vector.shape_cast %562 : vector<1x6x1xf32> to vector<6x1xf32>
    %564 = vector.extract_strided_slice %310 {offsets = [2, 2], sizes = [1, 496], strides = [1, 1]} : vector<4x498xf32> to vector<1x496xf32>
    %565 = vector.broadcast %563 : vector<6x1xf32> to vector<6x496xf32>
    %566 = vector.broadcast %564 : vector<1x496xf32> to vector<6x496xf32>
    %567 = arith.mulf %565, %566 : vector<6x496xf32>
    %568 = arith.addf %561, %567 : vector<6x496xf32>
    %c15_226 = arith.constant 15 : index
    %c0_227 = arith.constant 0 : index
    %c0_228 = arith.constant 0 : index
    %569 = vector.load %arg3[%c15_226, %c0_227, %c0_228] : memref<20x6x1xf32, #tpu.memory_space<vmem>>, vector<1x6x1xf32>
    %570 = vector.shape_cast %569 : vector<1x6x1xf32> to vector<6x1xf32>
    %571 = vector.extract_strided_slice %310 {offsets = [3, 2], sizes = [1, 496], strides = [1, 1]} : vector<4x498xf32> to vector<1x496xf32>
    %572 = vector.broadcast %570 : vector<6x1xf32> to vector<6x496xf32>
    %573 = vector.broadcast %571 : vector<1x496xf32> to vector<6x496xf32>
    %574 = arith.mulf %572, %573 : vector<6x496xf32>
    %575 = arith.addf %568, %574 : vector<6x496xf32>
    %c16_229 = arith.constant 16 : index
    %c0_230 = arith.constant 0 : index
    %c0_231 = arith.constant 0 : index
    %576 = vector.load %arg3[%c16_229, %c0_230, %c0_231] : memref<20x6x1xf32, #tpu.memory_space<vmem>>, vector<1x6x1xf32>
    %577 = vector.shape_cast %576 : vector<1x6x1xf32> to vector<6x1xf32>
    %578 = vector.extract_strided_slice %319 {offsets = [0, 2], sizes = [1, 496], strides = [1, 1]} : vector<4x498xf32> to vector<1x496xf32>
    %579 = vector.broadcast %577 : vector<6x1xf32> to vector<6x496xf32>
    %580 = vector.broadcast %578 : vector<1x496xf32> to vector<6x496xf32>
    %581 = arith.mulf %579, %580 : vector<6x496xf32>
    %582 = arith.addf %575, %581 : vector<6x496xf32>
    %c17_232 = arith.constant 17 : index
    %c0_233 = arith.constant 0 : index
    %c0_234 = arith.constant 0 : index
    %583 = vector.load %arg3[%c17_232, %c0_233, %c0_234] : memref<20x6x1xf32, #tpu.memory_space<vmem>>, vector<1x6x1xf32>
    %584 = vector.shape_cast %583 : vector<1x6x1xf32> to vector<6x1xf32>
    %585 = vector.extract_strided_slice %319 {offsets = [1, 2], sizes = [1, 496], strides = [1, 1]} : vector<4x498xf32> to vector<1x496xf32>
    %586 = vector.broadcast %584 : vector<6x1xf32> to vector<6x496xf32>
    %587 = vector.broadcast %585 : vector<1x496xf32> to vector<6x496xf32>
    %588 = arith.mulf %586, %587 : vector<6x496xf32>
    %589 = arith.addf %582, %588 : vector<6x496xf32>
    %c18_235 = arith.constant 18 : index
    %c0_236 = arith.constant 0 : index
    %c0_237 = arith.constant 0 : index
    %590 = vector.load %arg3[%c18_235, %c0_236, %c0_237] : memref<20x6x1xf32, #tpu.memory_space<vmem>>, vector<1x6x1xf32>
    %591 = vector.shape_cast %590 : vector<1x6x1xf32> to vector<6x1xf32>
    %592 = vector.extract_strided_slice %319 {offsets = [2, 2], sizes = [1, 496], strides = [1, 1]} : vector<4x498xf32> to vector<1x496xf32>
    %593 = vector.broadcast %591 : vector<6x1xf32> to vector<6x496xf32>
    %594 = vector.broadcast %592 : vector<1x496xf32> to vector<6x496xf32>
    %595 = arith.mulf %593, %594 : vector<6x496xf32>
    %596 = arith.addf %589, %595 : vector<6x496xf32>
    %c19_238 = arith.constant 19 : index
    %c0_239 = arith.constant 0 : index
    %c0_240 = arith.constant 0 : index
    %597 = vector.load %arg3[%c19_238, %c0_239, %c0_240] : memref<20x6x1xf32, #tpu.memory_space<vmem>>, vector<1x6x1xf32>
    %598 = vector.shape_cast %597 : vector<1x6x1xf32> to vector<6x1xf32>
    %599 = vector.extract_strided_slice %319 {offsets = [3, 2], sizes = [1, 496], strides = [1, 1]} : vector<4x498xf32> to vector<1x496xf32>
    %600 = vector.broadcast %598 : vector<6x1xf32> to vector<6x496xf32>
    %601 = vector.broadcast %599 : vector<1x496xf32> to vector<6x496xf32>
    %602 = arith.mulf %600, %601 : vector<6x496xf32>
    %603 = arith.addf %596, %602 : vector<6x496xf32>
    %604 = vector.broadcast %9 : vector<6x1xf32> to vector<6x496xf32>
    %605 = arith.addf %603, %604 : vector<6x496xf32>
    %606 = vector.extract_strided_slice %462 {offsets = [0, 0], sizes = [6, 494], strides = [1, 1]} : vector<6x496xf32> to vector<6x494xf32>
    %607 = vector.extract_strided_slice %605 {offsets = [0, 0], sizes = [6, 494], strides = [1, 1]} : vector<6x496xf32> to vector<6x494xf32>
    %608 = vector.extract_strided_slice %462 {offsets = [0, 1], sizes = [6, 494], strides = [1, 1]} : vector<6x496xf32> to vector<6x494xf32>
    %609 = vector.extract_strided_slice %605 {offsets = [0, 1], sizes = [6, 494], strides = [1, 1]} : vector<6x496xf32> to vector<6x494xf32>
    %610 = vector.extract_strided_slice %462 {offsets = [0, 2], sizes = [6, 494], strides = [1, 1]} : vector<6x496xf32> to vector<6x494xf32>
    %611 = arith.maximumf %606, %607 : vector<6x494xf32>
    %612 = arith.maximumf %608, %609 : vector<6x494xf32>
    %613 = arith.maximumf %611, %612 : vector<6x494xf32>
    %614 = arith.maximumf %613, %610 : vector<6x494xf32>
    %c0_241 = arith.constant 0 : index
    %c0_242 = arith.constant 0 : index
    %615 = vector.load %arg5[%c0_241, %c0_242] : memref<6x494xf32, #tpu.memory_space<vmem>>, vector<6x494xf32>
    tpu.vector_store %arg5[%c0_241, %c0_242], %614 {strides = array<i32>} : memref<6x494xf32, #tpu.memory_space<vmem>>, vector<6x494xf32>,
    return
  }
}

</mosaic_0001>

<llo_original>
// kernel: tpu_custom_call.1
$region0: #{tpu_custom_call.1}
  #allocation0 [shape = 'u32[]', space=smem, size = 0x4, offset = 0x4, fixed_abs, tag = 'smem constant byte address 0x4 - core index']
  #allocation1 [shape = 'u32[144,128]{1,0:T(1,128)}', space=vmem, size = 0x12000, scoped, tag = 'internal scratch']
  %s0 = inlined_call_operand.vmem [shape: f32[4,2,500], index: 0, kind: input, shape index: {}]
  %s1 = inlined_call_operand.vmem [shape: f32[10,4,1], index: 1, kind: input, shape index: {}]
  %s2 = inlined_call_operand.vmem [shape: f32[4,1], index: 2, kind: input, shape index: {}]
  %s3 = inlined_call_operand.vmem [shape: f32[20,6,1], index: 3, kind: input, shape index: {}]
  %s4 = inlined_call_operand.vmem [shape: f32[6,1], index: 4, kind: input, shape index: {}]
  %s5 = inlined_call_operand.hbm [shape: f32[6,494], index: 5, kind: output, shape index: {}]
  %s6 = sld [smem:[#allocation0]]
  $region30: #{tpu_custom_call.1} parent=0
    _
  %s8 = ssub.s32 1, %s6
  %s9 = scalar_select 0, %s8, %s6
  $region1: #{tpu_custom_call.1} parent=0
    #allocation2 [shape = 'u8[16384]{0}', space=vmem, size = 0x4000, scoped, tag = 'output window, operand 0, single buffered']
    #allocation3 [shape = 's32[1]{0}', space=sflag, size = 0x4, scoped, tag = 'scoped memory for tpu_custom_call.1']
    %10 = vsyncpa [#allocation3], 0
    // Predicated region
    $region2: #{tpu_custom_call.1} parent=1 // pred_check
      _
    $region3: #{tpu_custom_call.1} parent=1 // pred_check_branch
      %12 = sbr.rel (0) target = $region5
    $region4: #{tpu_custom_call.1} parent=1 // pred_region
      _
    $region5: #{tpu_custom_call.1} parent=1 // pred_fallthru
      _
    // Predicated region
    $region6: #{tpu_custom_call.1} parent=1 // pred_check
      _
    $region7: #{tpu_custom_call.1} parent=1 // pred_check_branch
      %14 = sbr.rel (0) target = $region9
    $region8: #{tpu_custom_call.1} parent=1 // pred_region
      _
    $region9: #{tpu_custom_call.1} parent=1 // pred_fallthru
      _
    // Predicated region
    $region10: #{tpu_custom_call.1} parent=1 // pred_check
      _
    $region11: #{tpu_custom_call.1} parent=1 // pred_check_branch
      %16 = sbr.rel (0) target = $region13
    $region12: #{tpu_custom_call.1} parent=1 // pred_region
      _
    $region13: #{tpu_custom_call.1} parent=1 // pred_fallthru
      _
    // Predicated region
    $region14: #{tpu_custom_call.1} parent=1 // pred_check
      _
    $region15: #{tpu_custom_call.1} parent=1 // pred_check_branch
      %18 = sbr.rel (0) target = $region17
    $region16: #{tpu_custom_call.1} parent=1 // pred_region
      _
    $region17: #{tpu_custom_call.1} parent=1 // pred_fallthru
      _
    // Predicated region
    $region18: #{tpu_custom_call.1} parent=1 // pred_check
      _
    $region19: #{tpu_custom_call.1} parent=1 // pred_check_branch
      %20 = sbr.rel (0) target = $region21
    $region20: #{tpu_custom_call.1} parent=1 // pred_region
      _
    $region21: #{tpu_custom_call.1} parent=1 // pred_fallthru
      _
    %v21 = vld [vmem:[%s0] sm:$0xff]
    %s22 = scalar_lea.vmem %s0, 8
    %v23 = vld [vmem:[%s22] sm:$0xff]
    %s24 = scalar_lea.vmem %s0, 16
    %v25 = vld [vmem:[%s24] sm:$0xff]
    %s26 = scalar_lea.vmem %s0, 24
    %v27 = vld [vmem:[%s26] sm:$0xff]
    %v28 = vld [vmem:[%s2] sm:$0xf]
    %v29 = vld [vmem:[%s4] sm:$0x3f]
    %v30 = vld [vmem:[%s1] sm:$0xf]
    %32 = vset.pattern.permute.xlu0 0
    %33 = vperm.xlu0 %32, %v30
    %v34 = vpop.permute.xlu0 %33
    %v37 = vlaneseq
    %v38 = vshrl.u32 %v37, 7
    %v39 = vsub.s32 0, %v38
    %v40 = vrot.slane %v21, %v39
    %v41 = vlaneseq
    %v42 = vshrl.u32 %v41, 7
    %v43 = vsub.s32 2, %v42
    %v44 = vrot.slane %v21, %v43
    %v45 = vlaneseq
    %v46 = vshrl.u32 %v45, 7
    %v47 = vsub.s32 4, %v46
    %v48 = vrot.slane %v21, %v47
    %v49 = vlaneseq
    %v50 = vshrl.u32 %v49, 7
    %v51 = vsub.s32 6, %v50
    %v52 = vrot.slane %v21, %v51
    %v57 = vlaneseq
    %v58 = vshrl.u32 %v57, 7
    %v59 = vsub.s32 0, %v58
    %v60 = vrot.slane %v40, %v59
    %v61 = vlaneseq
    %v62 = vshrl.u32 %v61, 7
    %v63 = vsub.s32 0, %v62
    %v64 = vrot.slane %v44, %v63
    %v65 = vlaneseq
    %v66 = vshrl.u32 %v65, 7
    %v67 = vsub.s32 0, %v66
    %v68 = vrot.slane %v48, %v67
    %v69 = vlaneseq
    %v70 = vshrl.u32 %v69, 7
    %v71 = vsub.s32 0, %v70
    %v72 = vrot.slane %v52, %v71
    %v73 = vmul.f32 %v34, %v60
    %v74 = vmul.f32 %v34, %v64
    %v75 = vmul.f32 %v34, %v68
    %v76 = vmul.f32 %v34, %v72
    %v77 = vadd.f32 %v73, 0.0
    %v78 = vadd.f32 %v74, 0.0
    %v79 = vadd.f32 %v75, 0.0
    %v80 = vadd.f32 %v76, 0.0
    %s81 = scalar_lea.vmem %s1, 4
    %v82 = vld [vmem:[%s81] sm:$0xf]
    %84 = vset.pattern.permute.xlu0 0
    %85 = vperm.xlu0 %84, %v82
    %v86 = vpop.permute.xlu0 %85
    %v88 = vlaneseq
    %v89 = vshrl.u32 %v88, 7
    %v90 = vsub.s32 1, %v89
    %v91 = vrot.slane %v21, %v90
    %v92 = vlaneseq
    %v93 = vshrl.u32 %v92, 7
    %v94 = vsub.s32 3, %v93
    %v95 = vrot.slane %v21, %v94
    %v96 = vlaneseq
    %v97 = vshrl.u32 %v96, 7
    %v98 = vsub.s32 5, %v97
    %v99 = vrot.slane %v21, %v98
    %v100 = vlaneseq
    %v101 = vshrl.u32 %v100, 7
    %v102 = vsub.s32 7, %v101
    %v103 = vrot.slane %v21, %v102
    %v108 = vlaneseq
    %v109 = vshrl.u32 %v108, 7
    %v110 = vsub.s32 1, %v109
    %v111 = vrot.slane %v91, %v110
    %v112 = vlaneseq
    %v113 = vshrl.u32 %v112, 7
    %v114 = vsub.s32 1, %v113
    %v115 = vrot.slane %v95, %v114
    %v116 = vlaneseq
    %v117 = vshrl.u32 %v116, 7
    %v118 = vsub.s32 1, %v117
    %v119 = vrot.slane %v99, %v118
    %v120 = vlaneseq
    %v121 = vshrl.u32 %v120, 7
    %v122 = vsub.s32 1, %v121
    %v123 = vrot.slane %v103, %v122
    %v124 = vmul.f32 %v86, %v111
    %v125 = vmul.f32 %v86, %v115
    %v126 = vmul.f32 %v86, %v119
    %v127 = vmul.f32 %v86, %v123
    %v128 = vadd.f32 %v77, %v124
    %v129 = vadd.f32 %v78, %v125
    %v130 = vadd.f32 %v79, %v126
    %v131 = vadd.f32 %v80, %v127
    %s132 = scalar_lea.vmem %s1, 8
    %v133 = vld [vmem:[%s132] sm:$0xf]
    %135 = vset.pattern.permute.xlu0 0
    %136 = vperm.xlu0 %135, %v133
    %v137 = vpop.permute.xlu0 %136
    %v140 = vlaneseq
    %v141 = vshrl.u32 %v140, 7
    %v142 = vsub.s32 0, %v141
    %v143 = vrot.slane %v23, %v142
    %v144 = vlaneseq
    %v145 = vshrl.u32 %v144, 7
    %v146 = vsub.s32 2, %v145
    %v147 = vrot.slane %v23, %v146
    %v148 = vlaneseq
    %v149 = vshrl.u32 %v148, 7
    %v150 = vsub.s32 4, %v149
    %v151 = vrot.slane %v23, %v150
    %v152 = vlaneseq
    %v153 = vshrl.u32 %v152, 7
    %v154 = vsub.s32 6, %v153
    %v155 = vrot.slane %v23, %v154
    %v160 = vlaneseq
    %v161 = vshrl.u32 %v160, 7
    %v162 = vsub.s32 0, %v161
    %v163 = vrot.slane %v143, %v162
    %v164 = vlaneseq
    %v165 = vshrl.u32 %v164, 7
    %v166 = vsub.s32 0, %v165
    %v167 = vrot.slane %v147, %v166
    %v168 = vlaneseq
    %v169 = vshrl.u32 %v168, 7
    %v170 = vsub.s32 0, %v169
    %v171 = vrot.slane %v151, %v170
    %v172 = vlaneseq
    %v173 = vshrl.u32 %v172, 7
    %v174 = vsub.s32 0, %v173
    %v175 = vrot.slane %v155, %v174
    %v176 = vmul.f32 %v137, %v163
    %v177 = vmul.f32 %v137, %v167
    %v178 = vmul.f32 %v137, %v171
    %v179 = vmul.f32 %v137, %v175
    %v180 = vadd.f32 %v128, %v176
    %v181 = vadd.f32 %v129, %v177
    %v182 = vadd.f32 %v130, %v178
    %v183 = vadd.f32 %v131, %v179
    %s184 = scalar_lea.vmem %s1, 12
    %v185 = vld [vmem:[%s184] sm:$0xf]
    %187 = vset.pattern.permute.xlu0 0
    %188 = vperm.xlu0 %187, %v185
    %v189 = vpop.permute.xlu0 %188
    %v191 = vlaneseq
    %v192 = vshrl.u32 %v191, 7
    %v193 = vsub.s32 1, %v192
    %v194 = vrot.slane %v23, %v193
    %v195 = vlaneseq
    %v196 = vshrl.u32 %v195, 7
    %v197 = vsub.s32 3, %v196
    %v198 = vrot.slane %v23, %v197
    %v199 = vlaneseq
    %v200 = vshrl.u32 %v199, 7
    %v201 = vsub.s32 5, %v200
    %v202 = vrot.slane %v23, %v201
    %v203 = vlaneseq
    %v204 = vshrl.u32 %v203, 7
    %v205 = vsub.s32 7, %v204
    %v206 = vrot.slane %v23, %v205
    %v211 = vlaneseq
    %v212 = vshrl.u32 %v211, 7
    %v213 = vsub.s32 1, %v212
    %v214 = vrot.slane %v194, %v213
    %v215 = vlaneseq
    %v216 = vshrl.u32 %v215, 7
    %v217 = vsub.s32 1, %v216
    %v218 = vrot.slane %v198, %v217
    %v219 = vlaneseq
    %v220 = vshrl.u32 %v219, 7
    %v221 = vsub.s32 1, %v220
    %v222 = vrot.slane %v202, %v221
    %v223 = vlaneseq
    %v224 = vshrl.u32 %v223, 7
    %v225 = vsub.s32 1, %v224
    %v226 = vrot.slane %v206, %v225
    %v227 = vmul.f32 %v189, %v214
    %v228 = vmul.f32 %v189, %v218
    %v229 = vmul.f32 %v189, %v222
    %v230 = vmul.f32 %v189, %v226
    %v231 = vadd.f32 %v180, %v227
    %v232 = vadd.f32 %v181, %v228
    %v233 = vadd.f32 %v182, %v229
    %v234 = vadd.f32 %v183, %v230
    %s235 = scalar_lea.vmem %s1, 16
    %v236 = vld [vmem:[%s235] sm:$0xf]
    %238 = vset.pattern.permute.xlu0 0
    %239 = vperm.xlu0 %238, %v236
    %v240 = vpop.permute.xlu0 %239
    %v243 = vlaneseq
    %v244 = vshrl.u32 %v243, 7
    %v245 = vsub.s32 0, %v244
    %v246 = vrot.slane %v25, %v245
    %v247 = vlaneseq
    %v248 = vshrl.u32 %v247, 7
    %v249 = vsub.s32 2, %v248
    %v250 = vrot.slane %v25, %v249
    %v251 = vlaneseq
    %v252 = vshrl.u32 %v251, 7
    %v253 = vsub.s32 4, %v252
    %v254 = vrot.slane %v25, %v253
    %v255 = vlaneseq
    %v256 = vshrl.u32 %v255, 7
    %v257 = vsub.s32 6, %v256
    %v258 = vrot.slane %v25, %v257
    %v263 = vlaneseq
    %v264 = vshrl.u32 %v263, 7
    %v265 = vsub.s32 0, %v264
    %v266 = vrot.slane %v246, %v265
    %v267 = vlaneseq
    %v268 = vshrl.u32 %v267, 7
    %v269 = vsub.s32 0, %v268
    %v270 = vrot.slane %v250, %v269
    %v271 = vlaneseq
    %v272 = vshrl.u32 %v271, 7
    %v273 = vsub.s32 0, %v272
    %v274 = vrot.slane %v254, %v273
    %v275 = vlaneseq
    %v276 = vshrl.u32 %v275, 7
    %v277 = vsub.s32 0, %v276
    %v278 = vrot.slane %v258, %v277
    %v279 = vmul.f32 %v240, %v266
    %v280 = vmul.f32 %v240, %v270
    %v281 = vmul.f32 %v240, %v274
    %v282 = vmul.f32 %v240, %v278
    %v283 = vadd.f32 %v231, %v279
    %v284 = vadd.f32 %v232, %v280
    %v285 = vadd.f32 %v233, %v281
    %v286 = vadd.f32 %v234, %v282
    %s287 = scalar_lea.vmem %s1, 20
    %v288 = vld [vmem:[%s287] sm:$0xf]
    %290 = vset.pattern.permute.xlu0 0
    %291 = vperm.xlu0 %290, %v288
    %v292 = vpop.permute.xlu0 %291
    %v294 = vlaneseq
    %v295 = vshrl.u32 %v294, 7
    %v296 = vsub.s32 1, %v295
    %v297 = vrot.slane %v25, %v296
    %v298 = vlaneseq
    %v299 = vshrl.u32 %v298, 7
    %v300 = vsub.s32 3, %v299
    %v301 = vrot.slane %v25, %v300
    %v302 = vlaneseq
    %v303 = vshrl.u32 %v302, 7
    %v304 = vsub.s32 5, %v303
    %v305 = vrot.slane %v25, %v304
    %v306 = vlaneseq
    %v307 = vshrl.u32 %v306, 7
    %v308 = vsub.s32 7, %v307
    %v309 = vrot.slane %v25, %v308
    %v314 = vlaneseq
    %v315 = vshrl.u32 %v314, 7
    %v316 = vsub.s32 1, %v315
    %v317 = vrot.slane %v297, %v316
    %v318 = vlaneseq
    %v319 = vshrl.u32 %v318, 7
    %v320 = vsub.s32 1, %v319
    %v321 = vrot.slane %v301, %v320
    %v322 = vlaneseq
    %v323 = vshrl.u32 %v322, 7
    %v324 = vsub.s32 1, %v323
    %v325 = vrot.slane %v305, %v324
    %v326 = vlaneseq
    %v327 = vshrl.u32 %v326, 7
    %v328 = vsub.s32 1, %v327
    %v329 = vrot.slane %v309, %v328
    %v330 = vmul.f32 %v292, %v317
    %v331 = vmul.f32 %v292, %v321
    %v332 = vmul.f32 %v292, %v325
    %v333 = vmul.f32 %v292, %v329
    %v334 = vadd.f32 %v283, %v330
    %v335 = vadd.f32 %v284, %v331
    %v336 = vadd.f32 %v285, %v332
    %v337 = vadd.f32 %v286, %v333
    %s338 = scalar_lea.vmem %s1, 24
    %v339 = vld [vmem:[%s338] sm:$0xf]
    %341 = vset.pattern.permute.xlu0 0
    %342 = vperm.xlu0 %341, %v339
    %v343 = vpop.permute.xlu0 %342
    %v346 = vlaneseq
    %v347 = vshrl.u32 %v346, 7
    %v348 = vsub.s32 0, %v347
    %v349 = vrot.slane %v27, %v348
    %v350 = vlaneseq
    %v351 = vshrl.u32 %v350, 7
    %v352 = vsub.s32 2, %v351
    %v353 = vrot.slane %v27, %v352
    %v354 = vlaneseq
    %v355 = vshrl.u32 %v354, 7
    %v356 = vsub.s32 4, %v355
    %v357 = vrot.slane %v27, %v356
    %v358 = vlaneseq
    %v359 = vshrl.u32 %v358, 7
    %v360 = vsub.s32 6, %v359
    %v361 = vrot.slane %v27, %v360
    %v366 = vlaneseq
    %v367 = vshrl.u32 %v366, 7
    %v368 = vsub.s32 0, %v367
    %v369 = vrot.slane %v349, %v368
    %v370 = vlaneseq
    %v371 = vshrl.u32 %v370, 7
    %v372 = vsub.s32 0, %v371
    %v373 = vrot.slane %v353, %v372
    %v374 = vlaneseq
    %v375 = vshrl.u32 %v374, 7
    %v376 = vsub.s32 0, %v375
    %v377 = vrot.slane %v357, %v376
    %v378 = vlaneseq
    %v379 = vshrl.u32 %v378, 7
    %v380 = vsub.s32 0, %v379
    %v381 = vrot.slane %v361, %v380
    %v382 = vmul.f32 %v343, %v369
    %v383 = vmul.f32 %v343, %v373
    %v384 = vmul.f32 %v343, %v377
    %v385 = vmul.f32 %v343, %v381
    %v386 = vadd.f32 %v334, %v382
    %v387 = vadd.f32 %v335, %v383
    %v388 = vadd.f32 %v336, %v384
    %v389 = vadd.f32 %v337, %v385
    %s390 = scalar_lea.vmem %s1, 28
    %v391 = vld [vmem:[%s390] sm:$0xf]
    %393 = vset.pattern.permute.xlu0 0
    %394 = vperm.xlu0 %393, %v391
    %v395 = vpop.permute.xlu0 %394
    %v397 = vlaneseq
    %v398 = vshrl.u32 %v397, 7
    %v399 = vsub.s32 1, %v398
    %v400 = vrot.slane %v27, %v399
    %v401 = vlaneseq
    %v402 = vshrl.u32 %v401, 7
    %v403 = vsub.s32 3, %v402
    %v404 = vrot.slane %v27, %v403
    %v405 = vlaneseq
    %v406 = vshrl.u32 %v405, 7
    %v407 = vsub.s32 5, %v406
    %v408 = vrot.slane %v27, %v407
    %v409 = vlaneseq
    %v410 = vshrl.u32 %v409, 7
    %v411 = vsub.s32 7, %v410
    %v412 = vrot.slane %v27, %v411
    %v417 = vlaneseq
    %v418 = vshrl.u32 %v417, 7
    %v419 = vsub.s32 1, %v418
    %v420 = vrot.slane %v400, %v419
    %v421 = vlaneseq
    %v422 = vshrl.u32 %v421, 7
    %v423 = vsub.s32 1, %v422
    %v424 = vrot.slane %v404, %v423
    %v425 = vlaneseq
    %v426 = vshrl.u32 %v425, 7
    %v427 = vsub.s32 1, %v426
    %v428 = vrot.slane %v408, %v427
    %v429 = vlaneseq
    %v430 = vshrl.u32 %v429, 7
    %v431 = vsub.s32 1, %v430
    %v432 = vrot.slane %v412, %v431
    %v433 = vmul.f32 %v395, %v420
    %v434 = vmul.f32 %v395, %v424
    %v435 = vmul.f32 %v395, %v428
    %v436 = vmul.f32 %v395, %v432
    %v437 = vadd.f32 %v386, %v433
    %v438 = vadd.f32 %v387, %v434
    %v439 = vadd.f32 %v388, %v435
    %v440 = vadd.f32 %v389, %v436
    %s441 = scalar_lea.vmem %s1, 32
    %v442 = vld [vmem:[%s441] sm:$0xf]
    %444 = vset.pattern.permute.xlu0 0
    %445 = vperm.xlu0 %444, %v442
    %v446 = vpop.permute.xlu0 %445
    %v448 = vmul.f32 %v446, %v60
    %v449 = vmul.f32 %v446, %v64
    %v450 = vmul.f32 %v446, %v68
    %v451 = vmul.f32 %v446, %v72
    %456 = vrot.lane.b32.xlu0 %v448, 127
    %v457 = vpop.permute.xlu0 %456
    %458 = vrot.lane.b32.xlu0 %v449, 127
    %v459 = vpop.permute.xlu0 %458
    %460 = vrot.lane.b32.xlu0 %v450, 127
    %v461 = vpop.permute.xlu0 %460
    %462 = vrot.lane.b32.xlu0 %v451, 127
    %v463 = vpop.permute.xlu0 %462
    %vm464 = vcmask 1039360
    %v465 = vsel %vm464, %v457, %v459
    %v466 = vsel %vm464, %v459, %v461
    %v467 = vsel %vm464, %v461, %v463
    %v472 = vadd.f32 %v437, %v465
    %v473 = vadd.f32 %v438, %v466
    %v474 = vadd.f32 %v439, %v467
    %v475 = vadd.f32 %v440, %v463
    %s476 = scalar_lea.vmem %s1, 36
    %v477 = vld [vmem:[%s476] sm:$0xf]
    %479 = vset.pattern.permute.xlu0 0
    %480 = vperm.xlu0 %479, %v477
    %v481 = vpop.permute.xlu0 %480
    %v483 = vmul.f32 %v481, %v111
    %v484 = vmul.f32 %v481, %v115
    %v485 = vmul.f32 %v481, %v119
    %v486 = vmul.f32 %v481, %v123
    %491 = vrot.lane.b32.xlu0 %v483, 127
    %v492 = vpop.permute.xlu0 %491
    %493 = vrot.lane.b32.xlu0 %v484, 127
    %v494 = vpop.permute.xlu0 %493
    %495 = vrot.lane.b32.xlu0 %v485, 127
    %v496 = vpop.permute.xlu0 %495
    %497 = vrot.lane.b32.xlu0 %v486, 127
    %v498 = vpop.permute.xlu0 %497
    %v499 = vsel %vm464, %v492, %v494
    %v500 = vsel %vm464, %v494, %v496
    %v501 = vsel %vm464, %v496, %v498
    %v506 = vadd.f32 %v472, %v499
    %v507 = vadd.f32 %v473, %v500
    %v508 = vadd.f32 %v474, %v501
    %v509 = vadd.f32 %v475, %v498
    %511 = vset.pattern.permute.xlu0 0
    %512 = vperm.xlu0 %511, %v28
    %v513 = vpop.permute.xlu0 %512
    %v515 = vadd.f32 %v506, %v513
    %v516 = vadd.f32 %v507, %v513
    %v517 = vadd.f32 %v508, %v513
    %v518 = vadd.f32 %v509, %v513
    %v519 = vmul.f32 %v34, %v163
    %v520 = vmul.f32 %v34, %v167
    %v521 = vmul.f32 %v34, %v171
    %v522 = vmul.f32 %v34, %v175
    %v523 = vadd.f32 %v519, 0.0
    %v524 = vadd.f32 %v520, 0.0
    %v525 = vadd.f32 %v521, 0.0
    %v526 = vadd.f32 %v522, 0.0
    %v527 = vmul.f32 %v86, %v214
    %v528 = vmul.f32 %v86, %v218
    %v529 = vmul.f32 %v86, %v222
    %v530 = vmul.f32 %v86, %v226
    %v531 = vadd.f32 %v523, %v527
    %v532 = vadd.f32 %v524, %v528
    %v533 = vadd.f32 %v525, %v529
    %v534 = vadd.f32 %v526, %v530
    %v535 = vmul.f32 %v137, %v266
    %v536 = vmul.f32 %v137, %v270
    %v537 = vmul.f32 %v137, %v274
    %v538 = vmul.f32 %v137, %v278
    %v539 = vadd.f32 %v531, %v535
    %v540 = vadd.f32 %v532, %v536
    %v541 = vadd.f32 %v533, %v537
    %v542 = vadd.f32 %v534, %v538
    %v543 = vmul.f32 %v189, %v317
    %v544 = vmul.f32 %v189, %v321
    %v545 = vmul.f32 %v189, %v325
    %v546 = vmul.f32 %v189, %v329
    %v547 = vadd.f32 %v539, %v543
    %v548 = vadd.f32 %v540, %v544
    %v549 = vadd.f32 %v541, %v545
    %v550 = vadd.f32 %v542, %v546
    %v551 = vmul.f32 %v240, %v369
    %v552 = vmul.f32 %v240, %v373
    %v553 = vmul.f32 %v240, %v377
    %v554 = vmul.f32 %v240, %v381
    %v555 = vadd.f32 %v547, %v551
    %v556 = vadd.f32 %v548, %v552
    %v557 = vadd.f32 %v549, %v553
    %v558 = vadd.f32 %v550, %v554
    %v559 = vmul.f32 %v292, %v420
    %v560 = vmul.f32 %v292, %v424
    %v561 = vmul.f32 %v292, %v428
    %v562 = vmul.f32 %v292, %v432
    %v563 = vadd.f32 %v555, %v559
    %v564 = vadd.f32 %v556, %v560
    %v565 = vadd.f32 %v557, %v561
    %v566 = vadd.f32 %v558, %v562
    %v567 = vmul.f32 %v343, %v60
    %v568 = vmul.f32 %v343, %v64
    %v569 = vmul.f32 %v343, %v68
    %v570 = vmul.f32 %v343, %v72
    %575 = vrot.lane.b32.xlu0 %v567, 127
    %v576 = vpop.permute.xlu0 %575
    %577 = vrot.lane.b32.xlu0 %v568, 127
    %v578 = vpop.permute.xlu0 %577
    %579 = vrot.lane.b32.xlu0 %v569, 127
    %v580 = vpop.permute.xlu0 %579
    %581 = vrot.lane.b32.xlu0 %v570, 127
    %v582 = vpop.permute.xlu0 %581
    %v583 = vsel %vm464, %v576, %v578
    %v584 = vsel %vm464, %v578, %v580
    %v585 = vsel %vm464, %v580, %v582
    %v590 = vadd.f32 %v563, %v583
    %v591 = vadd.f32 %v564, %v584
    %v592 = vadd.f32 %v565, %v585
    %v593 = vadd.f32 %v566, %v582
    %v594 = vmul.f32 %v395, %v111
    %v595 = vmul.f32 %v395, %v115
    %v596 = vmul.f32 %v395, %v119
    %v597 = vmul.f32 %v395, %v123
    %602 = vrot.lane.b32.xlu0 %v594, 127
    %v603 = vpop.permute.xlu0 %602
    %604 = vrot.lane.b32.xlu0 %v595, 127
    %v605 = vpop.permute.xlu0 %604
    %606 = vrot.lane.b32.xlu0 %v596, 127
    %v607 = vpop.permute.xlu0 %606
    %608 = vrot.lane.b32.xlu0 %v597, 127
    %v609 = vpop.permute.xlu0 %608
    %v610 = vsel %vm464, %v603, %v605
    %v611 = vsel %vm464, %v605, %v607
    %v612 = vsel %vm464, %v607, %v609
    %v617 = vadd.f32 %v590, %v610
    %v618 = vadd.f32 %v591, %v611
    %v619 = vadd.f32 %v592, %v612
    %v620 = vadd.f32 %v593, %v609
    %v621 = vmul.f32 %v446, %v163
    %v622 = vmul.f32 %v446, %v167
    %v623 = vmul.f32 %v446, %v171
    %v624 = vmul.f32 %v446, %v175
    %629 = vrot.lane.b32.xlu0 %v621, 127
    %v630 = vpop.permute.xlu0 %629
    %631 = vrot.lane.b32.xlu0 %v622, 127
    %v632 = vpop.permute.xlu0 %631
    %633 = vrot.lane.b32.xlu0 %v623, 127
    %v634 = vpop.permute.xlu0 %633
    %635 = vrot.lane.b32.xlu0 %v624, 127
    %v636 = vpop.permute.xlu0 %635
    %v637 = vsel %vm464, %v630, %v632
    %v638 = vsel %vm464, %v632, %v634
    %v639 = vsel %vm464, %v634, %v636
    %v644 = vadd.f32 %v617, %v637
    %v645 = vadd.f32 %v618, %v638
    %v646 = vadd.f32 %v619, %v639
    %v647 = vadd.f32 %v620, %v636
    %v648 = vmul.f32 %v481, %v214
    %v649 = vmul.f32 %v481, %v218
    %v650 = vmul.f32 %v481, %v222
    %v651 = vmul.f32 %v481, %v226
    %656 = vrot.lane.b32.xlu0 %v648, 127
    %v657 = vpop.permute.xlu0 %656
    %658 = vrot.lane.b32.xlu0 %v649, 127
    %v659 = vpop.permute.xlu0 %658
    %660 = vrot.lane.b32.xlu0 %v650, 127
    %v661 = vpop.permute.xlu0 %660
    %662 = vrot.lane.b32.xlu0 %v651, 127
    %v663 = vpop.permute.xlu0 %662
    %v664 = vsel %vm464, %v657, %v659
    %v665 = vsel %vm464, %v659, %v661
    %v666 = vsel %vm464, %v661, %v663
    %v671 = vadd.f32 %v644, %v664
    %v672 = vadd.f32 %v645, %v665
    %v673 = vadd.f32 %v646, %v666
    %v674 = vadd.f32 %v647, %v663
    %v675 = vadd.f32 %v671, %v513
    %v676 = vadd.f32 %v672, %v513
    %v677 = vadd.f32 %v673, %v513
    %v678 = vadd.f32 %v674, %v513
    %v679 = vmul.f32 %v34, %v266
    %v680 = vmul.f32 %v34, %v270
    %v681 = vmul.f32 %v34, %v274
    %v682 = vmul.f32 %v34, %v278
    %v683 = vadd.f32 %v679, 0.0
    %v684 = vadd.f32 %v680, 0.0
    %v685 = vadd.f32 %v681, 0.0
    %v686 = vadd.f32 %v682, 0.0
    %v687 = vmul.f32 %v86, %v317
    %v688 = vmul.f32 %v86, %v321
    %v689 = vmul.f32 %v86, %v325
    %v690 = vmul.f32 %v86, %v329
    %v691 = vadd.f32 %v683, %v687
    %v692 = vadd.f32 %v684, %v688
    %v693 = vadd.f32 %v685, %v689
    %v694 = vadd.f32 %v686, %v690
    %v695 = vmul.f32 %v137, %v369
    %v696 = vmul.f32 %v137, %v373
    %v697 = vmul.f32 %v137, %v377
    %v698 = vmul.f32 %v137, %v381
    %v699 = vadd.f32 %v691, %v695
    %v700 = vadd.f32 %v692, %v696
    %v701 = vadd.f32 %v693, %v697
    %v702 = vadd.f32 %v694, %v698
    %v703 = vmul.f32 %v189, %v420
    %v704 = vmul.f32 %v189, %v424
    %v705 = vmul.f32 %v189, %v428
    %v706 = vmul.f32 %v189, %v432
    %v707 = vadd.f32 %v699, %v703
    %v708 = vadd.f32 %v700, %v704
    %v709 = vadd.f32 %v701, %v705
    %v710 = vadd.f32 %v702, %v706
    %v711 = vmul.f32 %v240, %v60
    %v712 = vmul.f32 %v240, %v64
    %v713 = vmul.f32 %v240, %v68
    %v714 = vmul.f32 %v240, %v72
    %719 = vrot.lane.b32.xlu0 %v711, 127
    %v720 = vpop.permute.xlu0 %719
    %721 = vrot.lane.b32.xlu0 %v712, 127
    %v722 = vpop.permute.xlu0 %721
    %723 = vrot.lane.b32.xlu0 %v713, 127
    %v724 = vpop.permute.xlu0 %723
    %725 = vrot.lane.b32.xlu0 %v714, 127
    %v726 = vpop.permute.xlu0 %725
    %v727 = vsel %vm464, %v720, %v722
    %v728 = vsel %vm464, %v722, %v724
    %v729 = vsel %vm464, %v724, %v726
    %v734 = vadd.f32 %v707, %v727
    %v735 = vadd.f32 %v708, %v728
    %v736 = vadd.f32 %v709, %v729
    %v737 = vadd.f32 %v710, %v726
    %v738 = vmul.f32 %v292, %v111
    %v739 = vmul.f32 %v292, %v115
    %v740 = vmul.f32 %v292, %v119
    %v741 = vmul.f32 %v292, %v123
    %746 = vrot.lane.b32.xlu0 %v738, 127
    %v747 = vpop.permute.xlu0 %746
    %748 = vrot.lane.b32.xlu0 %v739, 127
    %v749 = vpop.permute.xlu0 %748
    %750 = vrot.lane.b32.xlu0 %v740, 127
    %v751 = vpop.permute.xlu0 %750
    %752 = vrot.lane.b32.xlu0 %v741, 127
    %v753 = vpop.permute.xlu0 %752
    %v754 = vsel %vm464, %v747, %v749
    %v755 = vsel %vm464, %v749, %v751
    %v756 = vsel %vm464, %v751, %v753
    %v761 = vadd.f32 %v734, %v754
    %v762 = vadd.f32 %v735, %v755
    %v763 = vadd.f32 %v736, %v756
    %v764 = vadd.f32 %v737, %v753
    %v765 = vmul.f32 %v343, %v163
    %v766 = vmul.f32 %v343, %v167
    %v767 = vmul.f32 %v343, %v171
    %v768 = vmul.f32 %v343, %v175
    %773 = vrot.lane.b32.xlu0 %v765, 127
    %v774 = vpop.permute.xlu0 %773
    %775 = vrot.lane.b32.xlu0 %v766, 127
    %v776 = vpop.permute.xlu0 %775
    %777 = vrot.lane.b32.xlu0 %v767, 127
    %v778 = vpop.permute.xlu0 %777
    %779 = vrot.lane.b32.xlu0 %v768, 127
    %v780 = vpop.permute.xlu0 %779
    %v781 = vsel %vm464, %v774, %v776
    %v782 = vsel %vm464, %v776, %v778
    %v783 = vsel %vm464, %v778, %v780
    %v788 = vadd.f32 %v761, %v781
    %v789 = vadd.f32 %v762, %v782
    %v790 = vadd.f32 %v763, %v783
    %v791 = vadd.f32 %v764, %v780
    %v792 = vmul.f32 %v395, %v214
    %v793 = vmul.f32 %v395, %v218
    %v794 = vmul.f32 %v395, %v222
    %v795 = vmul.f32 %v395, %v226
    %800 = vrot.lane.b32.xlu0 %v792, 127
    %v801 = vpop.permute.xlu0 %800
    %802 = vrot.lane.b32.xlu0 %v793, 127
    %v803 = vpop.permute.xlu0 %802
    %804 = vrot.lane.b32.xlu0 %v794, 127
    %v805 = vpop.permute.xlu0 %804
    %806 = vrot.lane.b32.xlu0 %v795, 127
    %v807 = vpop.permute.xlu0 %806
    %v808 = vsel %vm464, %v801, %v803
    %v809 = vsel %vm464, %v803, %v805
    %v810 = vsel %vm464, %v805, %v807
    %v815 = vadd.f32 %v788, %v808
    %v816 = vadd.f32 %v789, %v809
    %v817 = vadd.f32 %v790, %v810
    %v818 = vadd.f32 %v791, %v807
    %v819 = vmul.f32 %v446, %v266
    %v820 = vmul.f32 %v446, %v270
    %v821 = vmul.f32 %v446, %v274
    %v822 = vmul.f32 %v446, %v278
    %827 = vrot.lane.b32.xlu0 %v819, 127
    %v828 = vpop.permute.xlu0 %827
    %829 = vrot.lane.b32.xlu0 %v820, 127
    %v830 = vpop.permute.xlu0 %829
    %831 = vrot.lane.b32.xlu0 %v821, 127
    %v832 = vpop.permute.xlu0 %831
    %833 = vrot.lane.b32.xlu0 %v822, 127
    %v834 = vpop.permute.xlu0 %833
    %v835 = vsel %vm464, %v828, %v830
    %v836 = vsel %vm464, %v830, %v832
    %v837 = vsel %vm464, %v832, %v834
    %v842 = vadd.f32 %v815, %v835
    %v843 = vadd.f32 %v816, %v836
    %v844 = vadd.f32 %v817, %v837
    %v845 = vadd.f32 %v818, %v834
    %v846 = vmul.f32 %v481, %v317
    %v847 = vmul.f32 %v481, %v321
    %v848 = vmul.f32 %v481, %v325
    %v849 = vmul.f32 %v481, %v329
    %854 = vrot.lane.b32.xlu0 %v846, 127
    %v855 = vpop.permute.xlu0 %854
    %856 = vrot.lane.b32.xlu0 %v847, 127
    %v857 = vpop.permute.xlu0 %856
    %858 = vrot.lane.b32.xlu0 %v848, 127
    %v859 = vpop.permute.xlu0 %858
    %860 = vrot.lane.b32.xlu0 %v849, 127
    %v861 = vpop.permute.xlu0 %860
    %v862 = vsel %vm464, %v855, %v857
    %v863 = vsel %vm464, %v857, %v859
    %v864 = vsel %vm464, %v859, %v861
    %v869 = vadd.f32 %v842, %v862
    %v870 = vadd.f32 %v843, %v863
    %v871 = vadd.f32 %v844, %v864
    %v872 = vadd.f32 %v845, %v861
    %v873 = vadd.f32 %v869, %v513
    %v874 = vadd.f32 %v870, %v513
    %v875 = vadd.f32 %v871, %v513
    %v876 = vadd.f32 %v872, %v513
    %v877 = vmul.f32 %v34, %v369
    %v878 = vmul.f32 %v34, %v373
    %v879 = vmul.f32 %v34, %v377
    %v880 = vmul.f32 %v34, %v381
    %v881 = vadd.f32 %v877, 0.0
    %v882 = vadd.f32 %v878, 0.0
    %v883 = vadd.f32 %v879, 0.0
    %v884 = vadd.f32 %v880, 0.0
    %v885 = vmul.f32 %v86, %v420
    %v886 = vmul.f32 %v86, %v424
    %v887 = vmul.f32 %v86, %v428
    %v888 = vmul.f32 %v86, %v432
    %v889 = vadd.f32 %v881, %v885
    %v890 = vadd.f32 %v882, %v886
    %v891 = vadd.f32 %v883, %v887
    %v892 = vadd.f32 %v884, %v888
    %v893 = vmul.f32 %v137, %v60
    %v894 = vmul.f32 %v137, %v64
    %v895 = vmul.f32 %v137, %v68
    %v896 = vmul.f32 %v137, %v72
    %901 = vrot.lane.b32.xlu0 %v893, 127
    %v902 = vpop.permute.xlu0 %901
    %903 = vrot.lane.b32.xlu0 %v894, 127
    %v904 = vpop.permute.xlu0 %903
    %905 = vrot.lane.b32.xlu0 %v895, 127
    %v906 = vpop.permute.xlu0 %905
    %907 = vrot.lane.b32.xlu0 %v896, 127
    %v908 = vpop.permute.xlu0 %907
    %v909 = vsel %vm464, %v902, %v904
    %v910 = vsel %vm464, %v904, %v906
    %v911 = vsel %vm464, %v906, %v908
    %v916 = vadd.f32 %v889, %v909
    %v917 = vadd.f32 %v890, %v910
    %v918 = vadd.f32 %v891, %v911
    %v919 = vadd.f32 %v892, %v908
    %v920 = vmul.f32 %v189, %v111
    %v921 = vmul.f32 %v189, %v115
    %v922 = vmul.f32 %v189, %v119
    %v923 = vmul.f32 %v189, %v123
    %928 = vrot.lane.b32.xlu0 %v920, 127
    %v929 = vpop.permute.xlu0 %928
    %930 = vrot.lane.b32.xlu0 %v921, 127
    %v931 = vpop.permute.xlu0 %930
    %932 = vrot.lane.b32.xlu0 %v922, 127
    %v933 = vpop.permute.xlu0 %932
    %934 = vrot.lane.b32.xlu0 %v923, 127
    %v935 = vpop.permute.xlu0 %934
    %v936 = vsel %vm464, %v929, %v931
    %v937 = vsel %vm464, %v931, %v933
    %v938 = vsel %vm464, %v933, %v935
    %v943 = vadd.f32 %v916, %v936
    %v944 = vadd.f32 %v917, %v937
    %v945 = vadd.f32 %v918, %v938
    %v946 = vadd.f32 %v919, %v935
    %v947 = vmul.f32 %v240, %v163
    %v948 = vmul.f32 %v240, %v167
    %v949 = vmul.f32 %v240, %v171
    %v950 = vmul.f32 %v240, %v175
    %955 = vrot.lane.b32.xlu0 %v947, 127
    %v956 = vpop.permute.xlu0 %955
    %957 = vrot.lane.b32.xlu0 %v948, 127
    %v958 = vpop.permute.xlu0 %957
    %959 = vrot.lane.b32.xlu0 %v949, 127
    %v960 = vpop.permute.xlu0 %959
    %961 = vrot.lane.b32.xlu0 %v950, 127
    %v962 = vpop.permute.xlu0 %961
    %v963 = vsel %vm464, %v956, %v958
    %v964 = vsel %vm464, %v958, %v960
    %v965 = vsel %vm464, %v960, %v962
    %v970 = vadd.f32 %v943, %v963
    %v971 = vadd.f32 %v944, %v964
    %v972 = vadd.f32 %v945, %v965
    %v973 = vadd.f32 %v946, %v962
    %v974 = vmul.f32 %v292, %v214
    %v975 = vmul.f32 %v292, %v218
    %v976 = vmul.f32 %v292, %v222
    %v977 = vmul.f32 %v292, %v226
    %982 = vrot.lane.b32.xlu0 %v974, 127
    %v983 = vpop.permute.xlu0 %982
    %984 = vrot.lane.b32.xlu0 %v975, 127
    %v985 = vpop.permute.xlu0 %984
    %986 = vrot.lane.b32.xlu0 %v976, 127
    %v987 = vpop.permute.xlu0 %986
    %988 = vrot.lane.b32.xlu0 %v977, 127
    %v989 = vpop.permute.xlu0 %988
    %v990 = vsel %vm464, %v983, %v985
    %v991 = vsel %vm464, %v985, %v987
    %v992 = vsel %vm464, %v987, %v989
    %v997 = vadd.f32 %v970, %v990
    %v998 = vadd.f32 %v971, %v991
    %v999 = vadd.f32 %v972, %v992
    %v1000 = vadd.f32 %v973, %v989
    %v1001 = vmul.f32 %v343, %v266
    %v1002 = vmul.f32 %v343, %v270
    %v1003 = vmul.f32 %v343, %v274
    %v1004 = vmul.f32 %v343, %v278
    %1009 = vrot.lane.b32.xlu0 %v1001, 127
    %v1010 = vpop.permute.xlu0 %1009
    %1011 = vrot.lane.b32.xlu0 %v1002, 127
    %v1012 = vpop.permute.xlu0 %1011
    %1013 = vrot.lane.b32.xlu0 %v1003, 127
    %v1014 = vpop.permute.xlu0 %1013
    %1015 = vrot.lane.b32.xlu0 %v1004, 127
    %v1016 = vpop.permute.xlu0 %1015
    %v1017 = vsel %vm464, %v1010, %v1012
    %v1018 = vsel %vm464, %v1012, %v1014
    %v1019 = vsel %vm464, %v1014, %v1016
    %v1024 = vadd.f32 %v997, %v1017
    %v1025 = vadd.f32 %v998, %v1018
    %v1026 = vadd.f32 %v999, %v1019
    %v1027 = vadd.f32 %v1000, %v1016
    %v1028 = vmul.f32 %v395, %v317
    %v1029 = vmul.f32 %v395, %v321
    %v1030 = vmul.f32 %v395, %v325
    %v1031 = vmul.f32 %v395, %v329
    %1036 = vrot.lane.b32.xlu0 %v1028, 127
    %v1037 = vpop.permute.xlu0 %1036
    %1038 = vrot.lane.b32.xlu0 %v1029, 127
    %v1039 = vpop.permute.xlu0 %1038
    %1040 = vrot.lane.b32.xlu0 %v1030, 127
    %v1041 = vpop.permute.xlu0 %1040
    %1042 = vrot.lane.b32.xlu0 %v1031, 127
    %v1043 = vpop.permute.xlu0 %1042
    %v1044 = vsel %vm464, %v1037, %v1039
    %v1045 = vsel %vm464, %v1039, %v1041
    %v1046 = vsel %vm464, %v1041, %v1043
    %v1051 = vadd.f32 %v1024, %v1044
    %v1052 = vadd.f32 %v1025, %v1045
    %v1053 = vadd.f32 %v1026, %v1046
    %v1054 = vadd.f32 %v1027, %v1043
    %v1055 = vmul.f32 %v446, %v369
    %v1056 = vmul.f32 %v446, %v373
    %v1057 = vmul.f32 %v446, %v377
    %v1058 = vmul.f32 %v446, %v381
    %1063 = vrot.lane.b32.xlu0 %v1055, 127
    %v1064 = vpop.permute.xlu0 %1063
    %1065 = vrot.lane.b32.xlu0 %v1056, 127
    %v1066 = vpop.permute.xlu0 %1065
    %1067 = vrot.lane.b32.xlu0 %v1057, 127
    %v1068 = vpop.permute.xlu0 %1067
    %1069 = vrot.lane.b32.xlu0 %v1058, 127
    %v1070 = vpop.permute.xlu0 %1069
    %v1071 = vsel %vm464, %v1064, %v1066
    %v1072 = vsel %vm464, %v1066, %v1068
    %v1073 = vsel %vm464, %v1068, %v1070
    %v1078 = vadd.f32 %v1051, %v1071
    %v1079 = vadd.f32 %v1052, %v1072
    %v1080 = vadd.f32 %v1053, %v1073
    %v1081 = vadd.f32 %v1054, %v1070
    %v1082 = vmul.f32 %v481, %v420
    %v1083 = vmul.f32 %v481, %v424
    %v1084 = vmul.f32 %v481, %v428
    %v1085 = vmul.f32 %v481, %v432
    %1090 = vrot.lane.b32.xlu0 %v1082, 127
    %v1091 = vpop.permute.xlu0 %1090
    %1092 = vrot.lane.b32.xlu0 %v1083, 127
    %v1093 = vpop.permute.xlu0 %1092
    %1094 = vrot.lane.b32.xlu0 %v1084, 127
    %v1095 = vpop.permute.xlu0 %1094
    %1096 = vrot.lane.b32.xlu0 %v1085, 127
    %v1097 = vpop.permute.xlu0 %1096
    %v1098 = vsel %vm464, %v1091, %v1093
    %v1099 = vsel %vm464, %v1093, %v1095
    %v1100 = vsel %vm464, %v1095, %v1097
    %v1105 = vadd.f32 %v1078, %v1098
    %v1106 = vadd.f32 %v1079, %v1099
    %v1107 = vadd.f32 %v1080, %v1100
    %v1108 = vadd.f32 %v1081, %v1097
    %v1109 = vadd.f32 %v1105, %v513
    %v1110 = vadd.f32 %v1106, %v513
    %v1111 = vadd.f32 %v1107, %v513
    %v1112 = vadd.f32 %v1108, %v513
    %v1113 = vmax.f32 %v515, %v675
    %v1114 = vmax.f32 %v516, %v676
    %v1115 = vmax.f32 %v517, %v677
    %v1116 = vmax.f32 %v518, %v678
    %v1117 = vmax.f32 %v873, %v1109
    %v1118 = vmax.f32 %v874, %v1110
    %v1119 = vmax.f32 %v875, %v1111
    %v1120 = vmax.f32 %v876, %v1112
    %v1121 = vmax.f32 %v1113, %v1117
    %v1122 = vmax.f32 %v1114, %v1118
    %v1123 = vmax.f32 %v1115, %v1119
    %v1124 = vmax.f32 %v1116, %v1120
    %1129 = vrot.lane.b32.xlu0 %v515, 127
    %v1130 = vpop.permute.xlu0 %1129
    %1131 = vrot.lane.b32.xlu0 %v516, 127
    %v1132 = vpop.permute.xlu0 %1131
    %1133 = vrot.lane.b32.xlu0 %v517, 127
    %v1134 = vpop.permute.xlu0 %1133
    %1135 = vrot.lane.b32.xlu0 %v518, 127
    %v1136 = vpop.permute.xlu0 %1135
    %v1137 = vsel %vm464, %v1130, %v1132
    %v1138 = vsel %vm464, %v1132, %v1134
    %v1139 = vsel %vm464, %v1134, %v1136
    %v1144 = vmax.f32 %v1121, %v1137
    %v1145 = vmax.f32 %v1122, %v1138
    %v1146 = vmax.f32 %v1123, %v1139
    %v1147 = vmax.f32 %v1124, %v1136
    %1152 = vrot.lane.b32.xlu0 %v1113, 127
    %v1153 = vpop.permute.xlu0 %1152
    %1154 = vrot.lane.b32.xlu0 %v1114, 127
    %v1155 = vpop.permute.xlu0 %1154
    %1156 = vrot.lane.b32.xlu0 %v1115, 127
    %v1157 = vpop.permute.xlu0 %1156
    %1158 = vrot.lane.b32.xlu0 %v1116, 127
    %v1159 = vpop.permute.xlu0 %1158
    %v1160 = vsel %vm464, %v1153, %v1155
    %v1161 = vsel %vm464, %v1155, %v1157
    %v1162 = vsel %vm464, %v1157, %v1159
    %v1167 = vmax.f32 %v1117, %v1160
    %v1168 = vmax.f32 %v1118, %v1161
    %v1169 = vmax.f32 %v1119, %v1162
    %v1170 = vmax.f32 %v1120, %v1159
    %1175 = vrot.lane.b32.xlu0 %v873, 127
    %v1176 = vpop.permute.xlu0 %1175
    %1177 = vrot.lane.b32.xlu0 %v874, 127
    %v1178 = vpop.permute.xlu0 %1177
    %1179 = vrot.lane.b32.xlu0 %v875, 127
    %v1180 = vpop.permute.xlu0 %1179
    %1181 = vrot.lane.b32.xlu0 %v876, 127
    %v1182 = vpop.permute.xlu0 %1181
    %v1183 = vsel %vm464, %v1176, %v1178
    %v1184 = vsel %vm464, %v1178, %v1180
    %v1185 = vsel %vm464, %v1180, %v1182
    %v1190 = vmax.f32 %v1167, %v1183
    %v1191 = vmax.f32 %v1168, %v1184
    %v1192 = vmax.f32 %v1169, %v1185
    %v1193 = vmax.f32 %v1170, %v1182
    %v1194 = vld [vmem:[%s3] sm:$0x3f]
    %1196 = vset.pattern.permute.xlu0 0
    %1197 = vperm.xlu0 %1196, %v1194
    %v1198 = vpop.permute.xlu0 %1197
    %v1200 = vlaneseq
    %v1201 = vshrl.u32 %v1200, 7
    %v1202 = vsub.s32 0, %v1201
    %v1203 = vrot.slane %v1144, %v1202
    %v1204 = vlaneseq
    %v1205 = vshrl.u32 %v1204, 7
    %v1206 = vsub.s32 0, %v1205
    %v1207 = vrot.slane %v1145, %v1206
    %v1208 = vlaneseq
    %v1209 = vshrl.u32 %v1208, 7
    %v1210 = vsub.s32 0, %v1209
    %v1211 = vrot.slane %v1146, %v1210
    %v1212 = vlaneseq
    %v1213 = vshrl.u32 %v1212, 7
    %v1214 = vsub.s32 0, %v1213
    %v1215 = vrot.slane %v1147, %v1214
    %v1216 = vmul.f32 %v1198, %v1203
    %v1217 = vmul.f32 %v1198, %v1207
    %v1218 = vmul.f32 %v1198, %v1211
    %v1219 = vmul.f32 %v1198, %v1215
    %v1220 = vadd.f32 %v1216, 0.0
    %v1221 = vadd.f32 %v1217, 0.0
    %v1222 = vadd.f32 %v1218, 0.0
    %v1223 = vadd.f32 %v1219, 0.0
    %s1224 = scalar_lea.vmem %s3, 8
    %v1225 = vld [vmem:[%s1224] sm:$0x3f]
    %1227 = vset.pattern.permute.xlu0 0
    %1228 = vperm.xlu0 %1227, %v1225
    %v1229 = vpop.permute.xlu0 %1228
    %v1231 = vlaneseq
    %v1232 = vshrl.u32 %v1231, 7
    %v1233 = vsub.s32 1, %v1232
    %v1234 = vrot.slane %v1144, %v1233
    %v1235 = vlaneseq
    %v1236 = vshrl.u32 %v1235, 7
    %v1237 = vsub.s32 1, %v1236
    %v1238 = vrot.slane %v1145, %v1237
    %v1239 = vlaneseq
    %v1240 = vshrl.u32 %v1239, 7
    %v1241 = vsub.s32 1, %v1240
    %v1242 = vrot.slane %v1146, %v1241
    %v1243 = vlaneseq
    %v1244 = vshrl.u32 %v1243, 7
    %v1245 = vsub.s32 1, %v1244
    %v1246 = vrot.slane %v1147, %v1245
    %v1247 = vmul.f32 %v1229, %v1234
    %v1248 = vmul.f32 %v1229, %v1238
    %v1249 = vmul.f32 %v1229, %v1242
    %v1250 = vmul.f32 %v1229, %v1246
    %v1251 = vadd.f32 %v1220, %v1247
    %v1252 = vadd.f32 %v1221, %v1248
    %v1253 = vadd.f32 %v1222, %v1249
    %v1254 = vadd.f32 %v1223, %v1250
    %s1255 = scalar_lea.vmem %s3, 16
    %v1256 = vld [vmem:[%s1255] sm:$0x3f]
    %1258 = vset.pattern.permute.xlu0 0
    %1259 = vperm.xlu0 %1258, %v1256
    %v1260 = vpop.permute.xlu0 %1259
    %v1262 = vlaneseq
    %v1263 = vshrl.u32 %v1262, 7
    %v1264 = vsub.s32 2, %v1263
    %v1265 = vrot.slane %v1144, %v1264
    %v1266 = vlaneseq
    %v1267 = vshrl.u32 %v1266, 7
    %v1268 = vsub.s32 2, %v1267
    %v1269 = vrot.slane %v1145, %v1268
    %v1270 = vlaneseq
    %v1271 = vshrl.u32 %v1270, 7
    %v1272 = vsub.s32 2, %v1271
    %v1273 = vrot.slane %v1146, %v1272
    %v1274 = vlaneseq
    %v1275 = vshrl.u32 %v1274, 7
    %v1276 = vsub.s32 2, %v1275
    %v1277 = vrot.slane %v1147, %v1276
    %v1278 = vmul.f32 %v1260, %v1265
    %v1279 = vmul.f32 %v1260, %v1269
    %v1280 = vmul.f32 %v1260, %v1273
    %v1281 = vmul.f32 %v1260, %v1277
    %v1282 = vadd.f32 %v1251, %v1278
    %v1283 = vadd.f32 %v1252, %v1279
    %v1284 = vadd.f32 %v1253, %v1280
    %v1285 = vadd.f32 %v1254, %v1281
    %s1286 = scalar_lea.vmem %s3, 24
    %v1287 = vld [vmem:[%s1286] sm:$0x3f]
    %1289 = vset.pattern.permute.xlu0 0
    %1290 = vperm.xlu0 %1289, %v1287
    %v1291 = vpop.permute.xlu0 %1290
    %v1293 = vlaneseq
    %v1294 = vshrl.u32 %v1293, 7
    %v1295 = vsub.s32 3, %v1294
    %v1296 = vrot.slane %v1144, %v1295
    %v1297 = vlaneseq
    %v1298 = vshrl.u32 %v1297, 7
    %v1299 = vsub.s32 3, %v1298
    %v1300 = vrot.slane %v1145, %v1299
    %v1301 = vlaneseq
    %v1302 = vshrl.u32 %v1301, 7
    %v1303 = vsub.s32 3, %v1302
    %v1304 = vrot.slane %v1146, %v1303
    %v1305 = vlaneseq
    %v1306 = vshrl.u32 %v1305, 7
    %v1307 = vsub.s32 3, %v1306
    %v1308 = vrot.slane %v1147, %v1307
    %v1309 = vmul.f32 %v1291, %v1296
    %v1310 = vmul.f32 %v1291, %v1300
    %v1311 = vmul.f32 %v1291, %v1304
    %v1312 = vmul.f32 %v1291, %v1308
    %v1313 = vadd.f32 %v1282, %v1309
    %v1314 = vadd.f32 %v1283, %v1310
    %v1315 = vadd.f32 %v1284, %v1311
    %v1316 = vadd.f32 %v1285, %v1312
    %s1317 = scalar_lea.vmem %s3, 32
    %v1318 = vld [vmem:[%s1317] sm:$0x3f]
    %1320 = vset.pattern.permute.xlu0 0
    %1321 = vperm.xlu0 %1320, %v1318
    %v1322 = vpop.permute.xlu0 %1321
    %v1324 = vlaneseq
    %v1325 = vshrl.u32 %v1324, 7
    %v1326 = vsub.s32 0, %v1325
    %v1327 = vrot.slane %v1190, %v1326
    %v1328 = vlaneseq
    %v1329 = vshrl.u32 %v1328, 7
    %v1330 = vsub.s32 0, %v1329
    %v1331 = vrot.slane %v1191, %v1330
    %v1332 = vlaneseq
    %v1333 = vshrl.u32 %v1332, 7
    %v1334 = vsub.s32 0, %v1333
    %v1335 = vrot.slane %v1192, %v1334
    %v1336 = vlaneseq
    %v1337 = vshrl.u32 %v1336, 7
    %v1338 = vsub.s32 0, %v1337
    %v1339 = vrot.slane %v1193, %v1338
    %v1340 = vmul.f32 %v1322, %v1327
    %v1341 = vmul.f32 %v1322, %v1331
    %v1342 = vmul.f32 %v1322, %v1335
    %v1343 = vmul.f32 %v1322, %v1339
    %v1344 = vadd.f32 %v1313, %v1340
    %v1345 = vadd.f32 %v1314, %v1341
    %v1346 = vadd.f32 %v1315, %v1342
    %v1347 = vadd.f32 %v1316, %v1343
    %s1348 = scalar_lea.vmem %s3, 40
    %v1349 = vld [vmem:[%s1348] sm:$0x3f]
    %1351 = vset.pattern.permute.xlu0 0
    %1352 = vperm.xlu0 %1351, %v1349
    %v1353 = vpop.permute.xlu0 %1352
    %v1355 = vlaneseq
    %v1356 = vshrl.u32 %v1355, 7
    %v1357 = vsub.s32 1, %v1356
    %v1358 = vrot.slane %v1190, %v1357
    %v1359 = vlaneseq
    %v1360 = vshrl.u32 %v1359, 7
    %v1361 = vsub.s32 1, %v1360
    %v1362 = vrot.slane %v1191, %v1361
    %v1363 = vlaneseq
    %v1364 = vshrl.u32 %v1363, 7
    %v1365 = vsub.s32 1, %v1364
    %v1366 = vrot.slane %v1192, %v1365
    %v1367 = vlaneseq
    %v1368 = vshrl.u32 %v1367, 7
    %v1369 = vsub.s32 1, %v1368
    %v1370 = vrot.slane %v1193, %v1369
    %v1371 = vmul.f32 %v1353, %v1358
    %v1372 = vmul.f32 %v1353, %v1362
    %v1373 = vmul.f32 %v1353, %v1366
    %v1374 = vmul.f32 %v1353, %v1370
    %v1375 = vadd.f32 %v1344, %v1371
    %v1376 = vadd.f32 %v1345, %v1372
    %v1377 = vadd.f32 %v1346, %v1373
    %v1378 = vadd.f32 %v1347, %v1374
    %s1379 = scalar_lea.vmem %s3, 48
    %v1380 = vld [vmem:[%s1379] sm:$0x3f]
    %1382 = vset.pattern.permute.xlu0 0
    %1383 = vperm.xlu0 %1382, %v1380
    %v1384 = vpop.permute.xlu0 %1383
    %v1386 = vlaneseq
    %v1387 = vshrl.u32 %v1386, 7
    %v1388 = vsub.s32 2, %v1387
    %v1389 = vrot.slane %v1190, %v1388
    %v1390 = vlaneseq
    %v1391 = vshrl.u32 %v1390, 7
    %v1392 = vsub.s32 2, %v1391
    %v1393 = vrot.slane %v1191, %v1392
    %v1394 = vlaneseq
    %v1395 = vshrl.u32 %v1394, 7
    %v1396 = vsub.s32 2, %v1395
    %v1397 = vrot.slane %v1192, %v1396
    %v1398 = vlaneseq
    %v1399 = vshrl.u32 %v1398, 7
    %v1400 = vsub.s32 2, %v1399
    %v1401 = vrot.slane %v1193, %v1400
    %v1402 = vmul.f32 %v1384, %v1389
    %v1403 = vmul.f32 %v1384, %v1393
    %v1404 = vmul.f32 %v1384, %v1397
    %v1405 = vmul.f32 %v1384, %v1401
    %v1406 = vadd.f32 %v1375, %v1402
    %v1407 = vadd.f32 %v1376, %v1403
    %v1408 = vadd.f32 %v1377, %v1404
    %v1409 = vadd.f32 %v1378, %v1405
    %s1410 = scalar_lea.vmem %s3, 56
    %v1411 = vld [vmem:[%s1410] sm:$0x3f]
    %1413 = vset.pattern.permute.xlu0 0
    %1414 = vperm.xlu0 %1413, %v1411
    %v1415 = vpop.permute.xlu0 %1414
    %v1417 = vlaneseq
    %v1418 = vshrl.u32 %v1417, 7
    %v1419 = vsub.s32 3, %v1418
    %v1420 = vrot.slane %v1190, %v1419
    %v1421 = vlaneseq
    %v1422 = vshrl.u32 %v1421, 7
    %v1423 = vsub.s32 3, %v1422
    %v1424 = vrot.slane %v1191, %v1423
    %v1425 = vlaneseq
    %v1426 = vshrl.u32 %v1425, 7
    %v1427 = vsub.s32 3, %v1426
    %v1428 = vrot.slane %v1192, %v1427
    %v1429 = vlaneseq
    %v1430 = vshrl.u32 %v1429, 7
    %v1431 = vsub.s32 3, %v1430
    %v1432 = vrot.slane %v1193, %v1431
    %v1433 = vmul.f32 %v1415, %v1420
    %v1434 = vmul.f32 %v1415, %v1424
    %v1435 = vmul.f32 %v1415, %v1428
    %v1436 = vmul.f32 %v1415, %v1432
    %v1437 = vadd.f32 %v1406, %v1433
    %v1438 = vadd.f32 %v1407, %v1434
    %v1439 = vadd.f32 %v1408, %v1435
    %v1440 = vadd.f32 %v1409, %v1436
    %s1441 = scalar_lea.vmem %s3, 64
    %v1442 = vld [vmem:[%s1441] sm:$0x3f]
    %1444 = vset.pattern.permute.xlu0 0
    %1445 = vperm.xlu0 %1444, %v1442
    %v1446 = vpop.permute.xlu0 %1445
    %v1448 = vmul.f32 %v1446, %v1203
    %v1449 = vmul.f32 %v1446, %v1207
    %v1450 = vmul.f32 %v1446, %v1211
    %v1451 = vmul.f32 %v1446, %v1215
    %1456 = vrot.lane.b32.xlu0 %v1448, 127
    %v1457 = vpop.permute.xlu0 %1456
    %1458 = vrot.lane.b32.xlu0 %v1449, 127
    %v1459 = vpop.permute.xlu0 %1458
    %1460 = vrot.lane.b32.xlu0 %v1450, 127
    %v1461 = vpop.permute.xlu0 %1460
    %1462 = vrot.lane.b32.xlu0 %v1451, 127
    %v1463 = vpop.permute.xlu0 %1462
    %v1464 = vsel %vm464, %v1457, %v1459
    %v1465 = vsel %vm464, %v1459, %v1461
    %v1466 = vsel %vm464, %v1461, %v1463
    %v1471 = vadd.f32 %v1437, %v1464
    %v1472 = vadd.f32 %v1438, %v1465
    %v1473 = vadd.f32 %v1439, %v1466
    %v1474 = vadd.f32 %v1440, %v1463
    %s1475 = scalar_lea.vmem %s3, 72
    %v1476 = vld [vmem:[%s1475] sm:$0x3f]
    %1478 = vset.pattern.permute.xlu0 0
    %1479 = vperm.xlu0 %1478, %v1476
    %v1480 = vpop.permute.xlu0 %1479
    %v1482 = vmul.f32 %v1480, %v1234
    %v1483 = vmul.f32 %v1480, %v1238
    %v1484 = vmul.f32 %v1480, %v1242
    %v1485 = vmul.f32 %v1480, %v1246
    %1490 = vrot.lane.b32.xlu0 %v1482, 127
    %v1491 = vpop.permute.xlu0 %1490
    %1492 = vrot.lane.b32.xlu0 %v1483, 127
    %v1493 = vpop.permute.xlu0 %1492
    %1494 = vrot.lane.b32.xlu0 %v1484, 127
    %v1495 = vpop.permute.xlu0 %1494
    %1496 = vrot.lane.b32.xlu0 %v1485, 127
    %v1497 = vpop.permute.xlu0 %1496
    %v1498 = vsel %vm464, %v1491, %v1493
    %v1499 = vsel %vm464, %v1493, %v1495
    %v1500 = vsel %vm464, %v1495, %v1497
    %v1505 = vadd.f32 %v1471, %v1498
    %v1506 = vadd.f32 %v1472, %v1499
    %v1507 = vadd.f32 %v1473, %v1500
    %v1508 = vadd.f32 %v1474, %v1497
    %s1509 = scalar_lea.vmem %s3, 80
    %v1510 = vld [vmem:[%s1509] sm:$0x3f]
    %1512 = vset.pattern.permute.xlu0 0
    %1513 = vperm.xlu0 %1512, %v1510
    %v1514 = vpop.permute.xlu0 %1513
    %v1516 = vmul.f32 %v1514, %v1265
    %v1517 = vmul.f32 %v1514, %v1269
    %v1518 = vmul.f32 %v1514, %v1273
    %v1519 = vmul.f32 %v1514, %v1277
    %1524 = vrot.lane.b32.xlu0 %v1516, 127
    %v1525 = vpop.permute.xlu0 %1524
    %1526 = vrot.lane.b32.xlu0 %v1517, 127
    %v1527 = vpop.permute.xlu0 %1526
    %1528 = vrot.lane.b32.xlu0 %v1518, 127
    %v1529 = vpop.permute.xlu0 %1528
    %1530 = vrot.lane.b32.xlu0 %v1519, 127
    %v1531 = vpop.permute.xlu0 %1530
    %v1532 = vsel %vm464, %v1525, %v1527
    %v1533 = vsel %vm464, %v1527, %v1529
    %v1534 = vsel %vm464, %v1529, %v1531
    %v1539 = vadd.f32 %v1505, %v1532
    %v1540 = vadd.f32 %v1506, %v1533
    %v1541 = vadd.f32 %v1507, %v1534
    %v1542 = vadd.f32 %v1508, %v1531
    %s1543 = scalar_lea.vmem %s3, 88
    %v1544 = vld [vmem:[%s1543] sm:$0x3f]
    %1546 = vset.pattern.permute.xlu0 0
    %1547 = vperm.xlu0 %1546, %v1544
    %v1548 = vpop.permute.xlu0 %1547
    %v1550 = vmul.f32 %v1548, %v1296
    %v1551 = vmul.f32 %v1548, %v1300
    %v1552 = vmul.f32 %v1548, %v1304
    %v1553 = vmul.f32 %v1548, %v1308
    %1558 = vrot.lane.b32.xlu0 %v1550, 127
    %v1559 = vpop.permute.xlu0 %1558
    %1560 = vrot.lane.b32.xlu0 %v1551, 127
    %v1561 = vpop.permute.xlu0 %1560
    %1562 = vrot.lane.b32.xlu0 %v1552, 127
    %v1563 = vpop.permute.xlu0 %1562
    %1564 = vrot.lane.b32.xlu0 %v1553, 127
    %v1565 = vpop.permute.xlu0 %1564
    %v1566 = vsel %vm464, %v1559, %v1561
    %v1567 = vsel %vm464, %v1561, %v1563
    %v1568 = vsel %vm464, %v1563, %v1565
    %v1573 = vadd.f32 %v1539, %v1566
    %v1574 = vadd.f32 %v1540, %v1567
    %v1575 = vadd.f32 %v1541, %v1568
    %v1576 = vadd.f32 %v1542, %v1565
    %s1577 = scalar_lea.vmem %s3, 96
    %v1578 = vld [vmem:[%s1577] sm:$0x3f]
    %1580 = vset.pattern.permute.xlu0 0
    %1581 = vperm.xlu0 %1580, %v1578
    %v1582 = vpop.permute.xlu0 %1581
    %v1584 = vmul.f32 %v1582, %v1327
    %v1585 = vmul.f32 %v1582, %v1331
    %v1586 = vmul.f32 %v1582, %v1335
    %v1587 = vmul.f32 %v1582, %v1339
    %1592 = vrot.lane.b32.xlu0 %v1584, 127
    %v1593 = vpop.permute.xlu0 %1592
    %1594 = vrot.lane.b32.xlu0 %v1585, 127
    %v1595 = vpop.permute.xlu0 %1594
    %1596 = vrot.lane.b32.xlu0 %v1586, 127
    %v1597 = vpop.permute.xlu0 %1596
    %1598 = vrot.lane.b32.xlu0 %v1587, 127
    %v1599 = vpop.permute.xlu0 %1598
    %v1600 = vsel %vm464, %v1593, %v1595
    %v1601 = vsel %vm464, %v1595, %v1597
    %v1602 = vsel %vm464, %v1597, %v1599
    %v1607 = vadd.f32 %v1573, %v1600
    %v1608 = vadd.f32 %v1574, %v1601
    %v1609 = vadd.f32 %v1575, %v1602
    %v1610 = vadd.f32 %v1576, %v1599
    %s1611 = scalar_lea.vmem %s3, 104
    %v1612 = vld [vmem:[%s1611] sm:$0x3f]
    %1614 = vset.pattern.permute.xlu0 0
    %1615 = vperm.xlu0 %1614, %v1612
    %v1616 = vpop.permute.xlu0 %1615
    %v1618 = vmul.f32 %v1616, %v1358
    %v1619 = vmul.f32 %v1616, %v1362
    %v1620 = vmul.f32 %v1616, %v1366
    %v1621 = vmul.f32 %v1616, %v1370
    %1626 = vrot.lane.b32.xlu0 %v1618, 127
    %v1627 = vpop.permute.xlu0 %1626
    %1628 = vrot.lane.b32.xlu0 %v1619, 127
    %v1629 = vpop.permute.xlu0 %1628
    %1630 = vrot.lane.b32.xlu0 %v1620, 127
    %v1631 = vpop.permute.xlu0 %1630
    %1632 = vrot.lane.b32.xlu0 %v1621, 127
    %v1633 = vpop.permute.xlu0 %1632
    %v1634 = vsel %vm464, %v1627, %v1629
    %v1635 = vsel %vm464, %v1629, %v1631
    %v1636 = vsel %vm464, %v1631, %v1633
    %v1641 = vadd.f32 %v1607, %v1634
    %v1642 = vadd.f32 %v1608, %v1635
    %v1643 = vadd.f32 %v1609, %v1636
    %v1644 = vadd.f32 %v1610, %v1633
    %s1645 = scalar_lea.vmem %s3, 112
    %v1646 = vld [vmem:[%s1645] sm:$0x3f]
    %1648 = vset.pattern.permute.xlu0 0
    %1649 = vperm.xlu0 %1648, %v1646
    %v1650 = vpop.permute.xlu0 %1649
    %v1652 = vmul.f32 %v1650, %v1389
    %v1653 = vmul.f32 %v1650, %v1393
    %v1654 = vmul.f32 %v1650, %v1397
    %v1655 = vmul.f32 %v1650, %v1401
    %1660 = vrot.lane.b32.xlu0 %v1652, 127
    %v1661 = vpop.permute.xlu0 %1660
    %1662 = vrot.lane.b32.xlu0 %v1653, 127
    %v1663 = vpop.permute.xlu0 %1662
    %1664 = vrot.lane.b32.xlu0 %v1654, 127
    %v1665 = vpop.permute.xlu0 %1664
    %1666 = vrot.lane.b32.xlu0 %v1655, 127
    %v1667 = vpop.permute.xlu0 %1666
    %v1668 = vsel %vm464, %v1661, %v1663
    %v1669 = vsel %vm464, %v1663, %v1665
    %v1670 = vsel %vm464, %v1665, %v1667
    %v1675 = vadd.f32 %v1641, %v1668
    %v1676 = vadd.f32 %v1642, %v1669
    %v1677 = vadd.f32 %v1643, %v1670
    %v1678 = vadd.f32 %v1644, %v1667
    %s1679 = scalar_lea.vmem %s3, 120
    %v1680 = vld [vmem:[%s1679] sm:$0x3f]
    %1682 = vset.pattern.permute.xlu0 0
    %1683 = vperm.xlu0 %1682, %v1680
    %v1684 = vpop.permute.xlu0 %1683
    %v1686 = vmul.f32 %v1684, %v1420
    %v1687 = vmul.f32 %v1684, %v1424
    %v1688 = vmul.f32 %v1684, %v1428
    %v1689 = vmul.f32 %v1684, %v1432
    %1694 = vrot.lane.b32.xlu0 %v1686, 127
    %v1695 = vpop.permute.xlu0 %1694
    %1696 = vrot.lane.b32.xlu0 %v1687, 127
    %v1697 = vpop.permute.xlu0 %1696
    %1698 = vrot.lane.b32.xlu0 %v1688, 127
    %v1699 = vpop.permute.xlu0 %1698
    %1700 = vrot.lane.b32.xlu0 %v1689, 127
    %v1701 = vpop.permute.xlu0 %1700
    %v1702 = vsel %vm464, %v1695, %v1697
    %v1703 = vsel %vm464, %v1697, %v1699
    %v1704 = vsel %vm464, %v1699, %v1701
    %v1709 = vadd.f32 %v1675, %v1702
    %v1710 = vadd.f32 %v1676, %v1703
    %v1711 = vadd.f32 %v1677, %v1704
    %v1712 = vadd.f32 %v1678, %v1701
    %s1713 = scalar_lea.vmem %s3, 128
    %v1714 = vld [vmem:[%s1713] sm:$0x3f]
    %1716 = vset.pattern.permute.xlu0 0
    %1717 = vperm.xlu0 %1716, %v1714
    %v1718 = vpop.permute.xlu0 %1717
    %v1720 = vmul.f32 %v1718, %v1203
    %v1721 = vmul.f32 %v1718, %v1207
    %v1722 = vmul.f32 %v1718, %v1211
    %v1723 = vmul.f32 %v1718, %v1215
    %1728 = vrot.lane.b32.xlu0 %v1720, 126
    %v1729 = vpop.permute.xlu0 %1728
    %1730 = vrot.lane.b32.xlu0 %v1721, 126
    %v1731 = vpop.permute.xlu0 %1730
    %1732 = vrot.lane.b32.xlu0 %v1722, 126
    %v1733 = vpop.permute.xlu0 %1732
    %1734 = vrot.lane.b32.xlu0 %v1723, 126
    %v1735 = vpop.permute.xlu0 %1734
    %vm1736 = vcmask 1031168
    %v1737 = vsel %vm1736, %v1729, %v1731
    %v1738 = vsel %vm1736, %v1731, %v1733
    %v1739 = vsel %vm1736, %v1733, %v1735
    %v1744 = vadd.f32 %v1709, %v1737
    %v1745 = vadd.f32 %v1710, %v1738
    %v1746 = vadd.f32 %v1711, %v1739
    %v1747 = vadd.f32 %v1712, %v1735
    %s1748 = scalar_lea.vmem %s3, 136
    %v1749 = vld [vmem:[%s1748] sm:$0x3f]
    %1751 = vset.pattern.permute.xlu0 0
    %1752 = vperm.xlu0 %1751, %v1749
    %v1753 = vpop.permute.xlu0 %1752
    %v1755 = vmul.f32 %v1753, %v1234
    %v1756 = vmul.f32 %v1753, %v1238
    %v1757 = vmul.f32 %v1753, %v1242
    %v1758 = vmul.f32 %v1753, %v1246
    %1763 = vrot.lane.b32.xlu0 %v1755, 126
    %v1764 = vpop.permute.xlu0 %1763
    %1765 = vrot.lane.b32.xlu0 %v1756, 126
    %v1766 = vpop.permute.xlu0 %1765
    %1767 = vrot.lane.b32.xlu0 %v1757, 126
    %v1768 = vpop.permute.xlu0 %1767
    %1769 = vrot.lane.b32.xlu0 %v1758, 126
    %v1770 = vpop.permute.xlu0 %1769
    %v1771 = vsel %vm1736, %v1764, %v1766
    %v1772 = vsel %vm1736, %v1766, %v1768
    %v1773 = vsel %vm1736, %v1768, %v1770
    %v1778 = vadd.f32 %v1744, %v1771
    %v1779 = vadd.f32 %v1745, %v1772
    %v1780 = vadd.f32 %v1746, %v1773
    %v1781 = vadd.f32 %v1747, %v1770
    %s1782 = scalar_lea.vmem %s3, 144
    %v1783 = vld [vmem:[%s1782] sm:$0x3f]
    %1785 = vset.pattern.permute.xlu0 0
    %1786 = vperm.xlu0 %1785, %v1783
    %v1787 = vpop.permute.xlu0 %1786
    %v1789 = vmul.f32 %v1787, %v1265
    %v1790 = vmul.f32 %v1787, %v1269
    %v1791 = vmul.f32 %v1787, %v1273
    %v1792 = vmul.f32 %v1787, %v1277
    %1797 = vrot.lane.b32.xlu0 %v1789, 126
    %v1798 = vpop.permute.xlu0 %1797
    %1799 = vrot.lane.b32.xlu0 %v1790, 126
    %v1800 = vpop.permute.xlu0 %1799
    %1801 = vrot.lane.b32.xlu0 %v1791, 126
    %v1802 = vpop.permute.xlu0 %1801
    %1803 = vrot.lane.b32.xlu0 %v1792, 126
    %v1804 = vpop.permute.xlu0 %1803
    %v1805 = vsel %vm1736, %v1798, %v1800
    %v1806 = vsel %vm1736, %v1800, %v1802
    %v1807 = vsel %vm1736, %v1802, %v1804
    %v1812 = vadd.f32 %v1778, %v1805
    %v1813 = vadd.f32 %v1779, %v1806
    %v1814 = vadd.f32 %v1780, %v1807
    %v1815 = vadd.f32 %v1781, %v1804
    %s1816 = scalar_lea.vmem %s3, 152
    %v1817 = vld [vmem:[%s1816] sm:$0x3f]
    %1819 = vset.pattern.permute.xlu0 0
    %1820 = vperm.xlu0 %1819, %v1817
    %v1821 = vpop.permute.xlu0 %1820
    %v1823 = vmul.f32 %v1821, %v1296
    %v1824 = vmul.f32 %v1821, %v1300
    %v1825 = vmul.f32 %v1821, %v1304
    %v1826 = vmul.f32 %v1821, %v1308
    %1831 = vrot.lane.b32.xlu0 %v1823, 126
    %v1832 = vpop.permute.xlu0 %1831
    %1833 = vrot.lane.b32.xlu0 %v1824, 126
    %v1834 = vpop.permute.xlu0 %1833
    %1835 = vrot.lane.b32.xlu0 %v1825, 126
    %v1836 = vpop.permute.xlu0 %1835
    %1837 = vrot.lane.b32.xlu0 %v1826, 126
    %v1838 = vpop.permute.xlu0 %1837
    %v1839 = vsel %vm1736, %v1832, %v1834
    %v1840 = vsel %vm1736, %v1834, %v1836
    %v1841 = vsel %vm1736, %v1836, %v1838
    %v1846 = vadd.f32 %v1812, %v1839
    %v1847 = vadd.f32 %v1813, %v1840
    %v1848 = vadd.f32 %v1814, %v1841
    %v1849 = vadd.f32 %v1815, %v1838
    %1851 = vset.pattern.permute.xlu0 0
    %1852 = vperm.xlu0 %1851, %v29
    %v1853 = vpop.permute.xlu0 %1852
    %v1855 = vadd.f32 %v1846, %v1853
    %v1856 = vadd.f32 %v1847, %v1853
    %v1857 = vadd.f32 %v1848, %v1853
    %v1858 = vadd.f32 %v1849, %v1853
    %v1859 = vmul.f32 %v1198, %v1327
    %v1860 = vmul.f32 %v1198, %v1331
    %v1861 = vmul.f32 %v1198, %v1335
    %v1862 = vmul.f32 %v1198, %v1339
    %v1863 = vadd.f32 %v1859, 0.0
    %v1864 = vadd.f32 %v1860, 0.0
    %v1865 = vadd.f32 %v1861, 0.0
    %v1866 = vadd.f32 %v1862, 0.0
    %v1867 = vmul.f32 %v1229, %v1358
    %v1868 = vmul.f32 %v1229, %v1362
    %v1869 = vmul.f32 %v1229, %v1366
    %v1870 = vmul.f32 %v1229, %v1370
    %v1871 = vadd.f32 %v1863, %v1867
    %v1872 = vadd.f32 %v1864, %v1868
    %v1873 = vadd.f32 %v1865, %v1869
    %v1874 = vadd.f32 %v1866, %v1870
    %v1875 = vmul.f32 %v1260, %v1389
    %v1876 = vmul.f32 %v1260, %v1393
    %v1877 = vmul.f32 %v1260, %v1397
    %v1878 = vmul.f32 %v1260, %v1401
    %v1879 = vadd.f32 %v1871, %v1875
    %v1880 = vadd.f32 %v1872, %v1876
    %v1881 = vadd.f32 %v1873, %v1877
    %v1882 = vadd.f32 %v1874, %v1878
    %v1883 = vmul.f32 %v1291, %v1420
    %v1884 = vmul.f32 %v1291, %v1424
    %v1885 = vmul.f32 %v1291, %v1428
    %v1886 = vmul.f32 %v1291, %v1432
    %v1887 = vadd.f32 %v1879, %v1883
    %v1888 = vadd.f32 %v1880, %v1884
    %v1889 = vadd.f32 %v1881, %v1885
    %v1890 = vadd.f32 %v1882, %v1886
    %v1891 = vmul.f32 %v1322, %v1203
    %v1892 = vmul.f32 %v1322, %v1207
    %v1893 = vmul.f32 %v1322, %v1211
    %v1894 = vmul.f32 %v1322, %v1215
    %1899 = vrot.lane.b32.xlu0 %v1891, 127
    %v1900 = vpop.permute.xlu0 %1899
    %1901 = vrot.lane.b32.xlu0 %v1892, 127
    %v1902 = vpop.permute.xlu0 %1901
    %1903 = vrot.lane.b32.xlu0 %v1893, 127
    %v1904 = vpop.permute.xlu0 %1903
    %1905 = vrot.lane.b32.xlu0 %v1894, 127
    %v1906 = vpop.permute.xlu0 %1905
    %v1907 = vsel %vm464, %v1900, %v1902
    %v1908 = vsel %vm464, %v1902, %v1904
    %v1909 = vsel %vm464, %v1904, %v1906
    %v1914 = vadd.f32 %v1887, %v1907
    %v1915 = vadd.f32 %v1888, %v1908
    %v1916 = vadd.f32 %v1889, %v1909
    %v1917 = vadd.f32 %v1890, %v1906
    %v1918 = vmul.f32 %v1353, %v1234
    %v1919 = vmul.f32 %v1353, %v1238
    %v1920 = vmul.f32 %v1353, %v1242
    %v1921 = vmul.f32 %v1353, %v1246
    %1926 = vrot.lane.b32.xlu0 %v1918, 127
    %v1927 = vpop.permute.xlu0 %1926
    %1928 = vrot.lane.b32.xlu0 %v1919, 127
    %v1929 = vpop.permute.xlu0 %1928
    %1930 = vrot.lane.b32.xlu0 %v1920, 127
    %v1931 = vpop.permute.xlu0 %1930
    %1932 = vrot.lane.b32.xlu0 %v1921, 127
    %v1933 = vpop.permute.xlu0 %1932
    %v1934 = vsel %vm464, %v1927, %v1929
    %v1935 = vsel %vm464, %v1929, %v1931
    %v1936 = vsel %vm464, %v1931, %v1933
    %v1941 = vadd.f32 %v1914, %v1934
    %v1942 = vadd.f32 %v1915, %v1935
    %v1943 = vadd.f32 %v1916, %v1936
    %v1944 = vadd.f32 %v1917, %v1933
    %v1945 = vmul.f32 %v1384, %v1265
    %v1946 = vmul.f32 %v1384, %v1269
    %v1947 = vmul.f32 %v1384, %v1273
    %v1948 = vmul.f32 %v1384, %v1277
    %1953 = vrot.lane.b32.xlu0 %v1945, 127
    %v1954 = vpop.permute.xlu0 %1953
    %1955 = vrot.lane.b32.xlu0 %v1946, 127
    %v1956 = vpop.permute.xlu0 %1955
    %1957 = vrot.lane.b32.xlu0 %v1947, 127
    %v1958 = vpop.permute.xlu0 %1957
    %1959 = vrot.lane.b32.xlu0 %v1948, 127
    %v1960 = vpop.permute.xlu0 %1959
    %v1961 = vsel %vm464, %v1954, %v1956
    %v1962 = vsel %vm464, %v1956, %v1958
    %v1963 = vsel %vm464, %v1958, %v1960
    %v1968 = vadd.f32 %v1941, %v1961
    %v1969 = vadd.f32 %v1942, %v1962
    %v1970 = vadd.f32 %v1943, %v1963
    %v1971 = vadd.f32 %v1944, %v1960
    %v1972 = vmul.f32 %v1415, %v1296
    %v1973 = vmul.f32 %v1415, %v1300
    %v1974 = vmul.f32 %v1415, %v1304
    %v1975 = vmul.f32 %v1415, %v1308
    %1980 = vrot.lane.b32.xlu0 %v1972, 127
    %v1981 = vpop.permute.xlu0 %1980
    %1982 = vrot.lane.b32.xlu0 %v1973, 127
    %v1983 = vpop.permute.xlu0 %1982
    %1984 = vrot.lane.b32.xlu0 %v1974, 127
    %v1985 = vpop.permute.xlu0 %1984
    %1986 = vrot.lane.b32.xlu0 %v1975, 127
    %v1987 = vpop.permute.xlu0 %1986
    %v1988 = vsel %vm464, %v1981, %v1983
    %v1989 = vsel %vm464, %v1983, %v1985
    %v1990 = vsel %vm464, %v1985, %v1987
    %v1995 = vadd.f32 %v1968, %v1988
    %v1996 = vadd.f32 %v1969, %v1989
    %v1997 = vadd.f32 %v1970, %v1990
    %v1998 = vadd.f32 %v1971, %v1987
    %v1999 = vmul.f32 %v1446, %v1327
    %v2000 = vmul.f32 %v1446, %v1331
    %v2001 = vmul.f32 %v1446, %v1335
    %v2002 = vmul.f32 %v1446, %v1339
    %2007 = vrot.lane.b32.xlu0 %v1999, 127
    %v2008 = vpop.permute.xlu0 %2007
    %2009 = vrot.lane.b32.xlu0 %v2000, 127
    %v2010 = vpop.permute.xlu0 %2009
    %2011 = vrot.lane.b32.xlu0 %v2001, 127
    %v2012 = vpop.permute.xlu0 %2011
    %2013 = vrot.lane.b32.xlu0 %v2002, 127
    %v2014 = vpop.permute.xlu0 %2013
    %v2015 = vsel %vm464, %v2008, %v2010
    %v2016 = vsel %vm464, %v2010, %v2012
    %v2017 = vsel %vm464, %v2012, %v2014
    %v2022 = vadd.f32 %v1995, %v2015
    %v2023 = vadd.f32 %v1996, %v2016
    %v2024 = vadd.f32 %v1997, %v2017
    %v2025 = vadd.f32 %v1998, %v2014
    %v2026 = vmul.f32 %v1480, %v1358
    %v2027 = vmul.f32 %v1480, %v1362
    %v2028 = vmul.f32 %v1480, %v1366
    %v2029 = vmul.f32 %v1480, %v1370
    %2034 = vrot.lane.b32.xlu0 %v2026, 127
    %v2035 = vpop.permute.xlu0 %2034
    %2036 = vrot.lane.b32.xlu0 %v2027, 127
    %v2037 = vpop.permute.xlu0 %2036
    %2038 = vrot.lane.b32.xlu0 %v2028, 127
    %v2039 = vpop.permute.xlu0 %2038
    %2040 = vrot.lane.b32.xlu0 %v2029, 127
    %v2041 = vpop.permute.xlu0 %2040
    %v2042 = vsel %vm464, %v2035, %v2037
    %v2043 = vsel %vm464, %v2037, %v2039
    %v2044 = vsel %vm464, %v2039, %v2041
    %v2049 = vadd.f32 %v2022, %v2042
    %v2050 = vadd.f32 %v2023, %v2043
    %v2051 = vadd.f32 %v2024, %v2044
    %v2052 = vadd.f32 %v2025, %v2041
    %v2053 = vmul.f32 %v1514, %v1389
    %v2054 = vmul.f32 %v1514, %v1393
    %v2055 = vmul.f32 %v1514, %v1397
    %v2056 = vmul.f32 %v1514, %v1401
    %2061 = vrot.lane.b32.xlu0 %v2053, 127
    %v2062 = vpop.permute.xlu0 %2061
    %2063 = vrot.lane.b32.xlu0 %v2054, 127
    %v2064 = vpop.permute.xlu0 %2063
    %2065 = vrot.lane.b32.xlu0 %v2055, 127
    %v2066 = vpop.permute.xlu0 %2065
    %2067 = vrot.lane.b32.xlu0 %v2056, 127
    %v2068 = vpop.permute.xlu0 %2067
    %v2069 = vsel %vm464, %v2062, %v2064
    %v2070 = vsel %vm464, %v2064, %v2066
    %v2071 = vsel %vm464, %v2066, %v2068
    %v2076 = vadd.f32 %v2049, %v2069
    %v2077 = vadd.f32 %v2050, %v2070
    %v2078 = vadd.f32 %v2051, %v2071
    %v2079 = vadd.f32 %v2052, %v2068
    %v2080 = vmul.f32 %v1548, %v1420
    %v2081 = vmul.f32 %v1548, %v1424
    %v2082 = vmul.f32 %v1548, %v1428
    %v2083 = vmul.f32 %v1548, %v1432
    %2088 = vrot.lane.b32.xlu0 %v2080, 127
    %v2089 = vpop.permute.xlu0 %2088
    %2090 = vrot.lane.b32.xlu0 %v2081, 127
    %v2091 = vpop.permute.xlu0 %2090
    %2092 = vrot.lane.b32.xlu0 %v2082, 127
    %v2093 = vpop.permute.xlu0 %2092
    %2094 = vrot.lane.b32.xlu0 %v2083, 127
    %v2095 = vpop.permute.xlu0 %2094
    %v2096 = vsel %vm464, %v2089, %v2091
    %v2097 = vsel %vm464, %v2091, %v2093
    %v2098 = vsel %vm464, %v2093, %v2095
    %v2103 = vadd.f32 %v2076, %v2096
    %v2104 = vadd.f32 %v2077, %v2097
    %v2105 = vadd.f32 %v2078, %v2098
    %v2106 = vadd.f32 %v2079, %v2095
    %v2107 = vmul.f32 %v1582, %v1203
    %v2108 = vmul.f32 %v1582, %v1207
    %v2109 = vmul.f32 %v1582, %v1211
    %v2110 = vmul.f32 %v1582, %v1215
    %2115 = vrot.lane.b32.xlu0 %v2107, 126
    %v2116 = vpop.permute.xlu0 %2115
    %2117 = vrot.lane.b32.xlu0 %v2108, 126
    %v2118 = vpop.permute.xlu0 %2117
    %2119 = vrot.lane.b32.xlu0 %v2109, 126
    %v2120 = vpop.permute.xlu0 %2119
    %2121 = vrot.lane.b32.xlu0 %v2110, 126
    %v2122 = vpop.permute.xlu0 %2121
    %v2123 = vsel %vm1736, %v2116, %v2118
    %v2124 = vsel %vm1736, %v2118, %v2120
    %v2125 = vsel %vm1736, %v2120, %v2122
    %v2130 = vadd.f32 %v2103, %v2123
    %v2131 = vadd.f32 %v2104, %v2124
    %v2132 = vadd.f32 %v2105, %v2125
    %v2133 = vadd.f32 %v2106, %v2122
    %v2134 = vmul.f32 %v1616, %v1234
    %v2135 = vmul.f32 %v1616, %v1238
    %v2136 = vmul.f32 %v1616, %v1242
    %v2137 = vmul.f32 %v1616, %v1246
    %2142 = vrot.lane.b32.xlu0 %v2134, 126
    %v2143 = vpop.permute.xlu0 %2142
    %2144 = vrot.lane.b32.xlu0 %v2135, 126
    %v2145 = vpop.permute.xlu0 %2144
    %2146 = vrot.lane.b32.xlu0 %v2136, 126
    %v2147 = vpop.permute.xlu0 %2146
    %2148 = vrot.lane.b32.xlu0 %v2137, 126
    %v2149 = vpop.permute.xlu0 %2148
    %v2150 = vsel %vm1736, %v2143, %v2145
    %v2151 = vsel %vm1736, %v2145, %v2147
    %v2152 = vsel %vm1736, %v2147, %v2149
    %v2157 = vadd.f32 %v2130, %v2150
    %v2158 = vadd.f32 %v2131, %v2151
    %v2159 = vadd.f32 %v2132, %v2152
    %v2160 = vadd.f32 %v2133, %v2149
    %v2161 = vmul.f32 %v1650, %v1265
    %v2162 = vmul.f32 %v1650, %v1269
    %v2163 = vmul.f32 %v1650, %v1273
    %v2164 = vmul.f32 %v1650, %v1277
    %2169 = vrot.lane.b32.xlu0 %v2161, 126
    %v2170 = vpop.permute.xlu0 %2169
    %2171 = vrot.lane.b32.xlu0 %v2162, 126
    %v2172 = vpop.permute.xlu0 %2171
    %2173 = vrot.lane.b32.xlu0 %v2163, 126
    %v2174 = vpop.permute.xlu0 %2173
    %2175 = vrot.lane.b32.xlu0 %v2164, 126
    %v2176 = vpop.permute.xlu0 %2175
    %v2177 = vsel %vm1736, %v2170, %v2172
    %v2178 = vsel %vm1736, %v2172, %v2174
    %v2179 = vsel %vm1736, %v2174, %v2176
    %v2184 = vadd.f32 %v2157, %v2177
    %v2185 = vadd.f32 %v2158, %v2178
    %v2186 = vadd.f32 %v2159, %v2179
    %v2187 = vadd.f32 %v2160, %v2176
    %v2188 = vmul.f32 %v1684, %v1296
    %v2189 = vmul.f32 %v1684, %v1300
    %v2190 = vmul.f32 %v1684, %v1304
    %v2191 = vmul.f32 %v1684, %v1308
    %2196 = vrot.lane.b32.xlu0 %v2188, 126
    %v2197 = vpop.permute.xlu0 %2196
    %2198 = vrot.lane.b32.xlu0 %v2189, 126
    %v2199 = vpop.permute.xlu0 %2198
    %2200 = vrot.lane.b32.xlu0 %v2190, 126
    %v2201 = vpop.permute.xlu0 %2200
    %2202 = vrot.lane.b32.xlu0 %v2191, 126
    %v2203 = vpop.permute.xlu0 %2202
    %v2204 = vsel %vm1736, %v2197, %v2199
    %v2205 = vsel %vm1736, %v2199, %v2201
    %v2206 = vsel %vm1736, %v2201, %v2203
    %v2211 = vadd.f32 %v2184, %v2204
    %v2212 = vadd.f32 %v2185, %v2205
    %v2213 = vadd.f32 %v2186, %v2206
    %v2214 = vadd.f32 %v2187, %v2203
    %v2215 = vmul.f32 %v1718, %v1327
    %v2216 = vmul.f32 %v1718, %v1331
    %v2217 = vmul.f32 %v1718, %v1335
    %v2218 = vmul.f32 %v1718, %v1339
    %2223 = vrot.lane.b32.xlu0 %v2215, 126
    %v2224 = vpop.permute.xlu0 %2223
    %2225 = vrot.lane.b32.xlu0 %v2216, 126
    %v2226 = vpop.permute.xlu0 %2225
    %2227 = vrot.lane.b32.xlu0 %v2217, 126
    %v2228 = vpop.permute.xlu0 %2227
    %2229 = vrot.lane.b32.xlu0 %v2218, 126
    %v2230 = vpop.permute.xlu0 %2229
    %v2231 = vsel %vm1736, %v2224, %v2226
    %v2232 = vsel %vm1736, %v2226, %v2228
    %v2233 = vsel %vm1736, %v2228, %v2230
    %v2238 = vadd.f32 %v2211, %v2231
    %v2239 = vadd.f32 %v2212, %v2232
    %v2240 = vadd.f32 %v2213, %v2233
    %v2241 = vadd.f32 %v2214, %v2230
    %v2242 = vmul.f32 %v1753, %v1358
    %v2243 = vmul.f32 %v1753, %v1362
    %v2244 = vmul.f32 %v1753, %v1366
    %v2245 = vmul.f32 %v1753, %v1370
    %2250 = vrot.lane.b32.xlu0 %v2242, 126
    %v2251 = vpop.permute.xlu0 %2250
    %2252 = vrot.lane.b32.xlu0 %v2243, 126
    %v2253 = vpop.permute.xlu0 %2252
    %2254 = vrot.lane.b32.xlu0 %v2244, 126
    %v2255 = vpop.permute.xlu0 %2254
    %2256 = vrot.lane.b32.xlu0 %v2245, 126
    %v2257 = vpop.permute.xlu0 %2256
    %v2258 = vsel %vm1736, %v2251, %v2253
    %v2259 = vsel %vm1736, %v2253, %v2255
    %v2260 = vsel %vm1736, %v2255, %v2257
    %v2265 = vadd.f32 %v2238, %v2258
    %v2266 = vadd.f32 %v2239, %v2259
    %v2267 = vadd.f32 %v2240, %v2260
    %v2268 = vadd.f32 %v2241, %v2257
    %v2269 = vmul.f32 %v1787, %v1389
    %v2270 = vmul.f32 %v1787, %v1393
    %v2271 = vmul.f32 %v1787, %v1397
    %v2272 = vmul.f32 %v1787, %v1401
    %2277 = vrot.lane.b32.xlu0 %v2269, 126
    %v2278 = vpop.permute.xlu0 %2277
    %2279 = vrot.lane.b32.xlu0 %v2270, 126
    %v2280 = vpop.permute.xlu0 %2279
    %2281 = vrot.lane.b32.xlu0 %v2271, 126
    %v2282 = vpop.permute.xlu0 %2281
    %2283 = vrot.lane.b32.xlu0 %v2272, 126
    %v2284 = vpop.permute.xlu0 %2283
    %v2285 = vsel %vm1736, %v2278, %v2280
    %v2286 = vsel %vm1736, %v2280, %v2282
    %v2287 = vsel %vm1736, %v2282, %v2284
    %v2292 = vadd.f32 %v2265, %v2285
    %v2293 = vadd.f32 %v2266, %v2286
    %v2294 = vadd.f32 %v2267, %v2287
    %v2295 = vadd.f32 %v2268, %v2284
    %v2296 = vmul.f32 %v1821, %v1420
    %v2297 = vmul.f32 %v1821, %v1424
    %v2298 = vmul.f32 %v1821, %v1428
    %v2299 = vmul.f32 %v1821, %v1432
    %2304 = vrot.lane.b32.xlu0 %v2296, 126
    %v2305 = vpop.permute.xlu0 %2304
    %2306 = vrot.lane.b32.xlu0 %v2297, 126
    %v2307 = vpop.permute.xlu0 %2306
    %2308 = vrot.lane.b32.xlu0 %v2298, 126
    %v2309 = vpop.permute.xlu0 %2308
    %2310 = vrot.lane.b32.xlu0 %v2299, 126
    %v2311 = vpop.permute.xlu0 %2310
    %v2312 = vsel %vm1736, %v2305, %v2307
    %v2313 = vsel %vm1736, %v2307, %v2309
    %v2314 = vsel %vm1736, %v2309, %v2311
    %v2319 = vadd.f32 %v2292, %v2312
    %v2320 = vadd.f32 %v2293, %v2313
    %v2321 = vadd.f32 %v2294, %v2314
    %v2322 = vadd.f32 %v2295, %v2311
    %v2323 = vadd.f32 %v2319, %v1853
    %v2324 = vadd.f32 %v2320, %v1853
    %v2325 = vadd.f32 %v2321, %v1853
    %v2326 = vadd.f32 %v2322, %v1853
    %v2327 = vmax.f32 %v1855, %v2323
    %v2328 = vmax.f32 %v1856, %v2324
    %v2329 = vmax.f32 %v1857, %v2325
    %v2330 = vmax.f32 %v1858, %v2326
    %2335 = vrot.lane.b32.xlu0 %v2327, 127
    %v2336 = vpop.permute.xlu0 %2335
    %2337 = vrot.lane.b32.xlu0 %v2328, 127
    %v2338 = vpop.permute.xlu0 %2337
    %2339 = vrot.lane.b32.xlu0 %v2329, 127
    %v2340 = vpop.permute.xlu0 %2339
    %2341 = vrot.lane.b32.xlu0 %v2330, 127
    %v2342 = vpop.permute.xlu0 %2341
    %v2343 = vsel %vm464, %v2336, %v2338
    %v2344 = vsel %vm464, %v2338, %v2340
    %v2345 = vsel %vm464, %v2340, %v2342
    %v2350 = vmax.f32 %v2327, %v2343
    %v2351 = vmax.f32 %v2328, %v2344
    %v2352 = vmax.f32 %v2329, %v2345
    %v2353 = vmax.f32 %v2330, %v2342
    %2358 = vrot.lane.b32.xlu0 %v1855, 126
    %v2359 = vpop.permute.xlu0 %2358
    %2360 = vrot.lane.b32.xlu0 %v1856, 126
    %v2361 = vpop.permute.xlu0 %2360
    %2362 = vrot.lane.b32.xlu0 %v1857, 126
    %v2363 = vpop.permute.xlu0 %2362
    %2364 = vrot.lane.b32.xlu0 %v1858, 126
    %v2365 = vpop.permute.xlu0 %2364
    %v2366 = vsel %vm1736, %v2359, %v2361
    %v2367 = vsel %vm1736, %v2361, %v2363
    %v2368 = vsel %vm1736, %v2363, %v2365
    %v2373 = vmax.f32 %v2350, %v2366
    %v2374 = vmax.f32 %v2351, %v2367
    %v2375 = vmax.f32 %v2352, %v2368
    %v2376 = vmax.f32 %v2353, %v2365
    %2377 = vst [vmem:[#allocation2] sm:$0x3f] %v2373
    %2378 = vst [vmem:[#allocation2 + $0x8] sm:$0x3f] %v2374
    %2379 = vst [vmem:[#allocation2 + $0x10] sm:$0x3f] %v2375
    %vm2380 = vcmask 898048
    %2381 = vst.msk [vmem:[#allocation2 + $0x18] sm:$0x3f] %vm2380, %v2376
    // Predicated region
    $region22: #{tpu_custom_call.1} parent=1 // pred_check
      _
    $region23: #{tpu_custom_call.1} parent=1 // pred_check_branch
      %2383 = sbr.rel (0) target = $region25
    $region24: #{tpu_custom_call.1} parent=1 // pred_region
      %s2385 = ssub.s32 512, 512
      %2386 = vsyncadd [#allocation3], %s2385
      %s2388 = sshll.u32 [#allocation2], 4
      %s2389 = int_to_ptr.vmem [resolvable:$true] %s2388
      %2391 = dma.vmem_to_hbm [thread:$0]  %s2389, 512, %s5, [#allocation3]
    $region25: #{tpu_custom_call.1} parent=1 // pred_fallthru
      _
    // Predicated region
    $region26: #{tpu_custom_call.1} parent=1 // pred_check
      _
    $region27: #{tpu_custom_call.1} parent=1 // pred_check_branch
      %2393 = sbr.rel (0) target = $region29
    $region28: #{tpu_custom_call.1} parent=1 // pred_region
      %2394 = dma.done [#allocation3], 512
    $region29: #{tpu_custom_call.1} parent=1 // pred_fallthru
      _
    %2395 = vsyncpa [#allocation3], 1

</llo_original>
